<compile_context>
chip_gen: v5e
topology: v5e:2x2
jax: 0.10.0
libtpu: 0.0.40
codegen_flags: <defaults>
</compile_context>

<pallas_src>
import functools
import numpy as np
import jax
import jax.numpy as jnp
from jax.experimental import pallas as pl
from jax.experimental.pallas import tpu as pltpu


# -------------------- shapes consistent with the module --------------------
P, D = 4, 32          # mixture components p, feature dim d
B, N = 2, 8           # batch size, set size
NUM_ITERS = 3
TAU = 1.0
LOG_2PI = float(np.log(2.0 * np.pi))


def _softplus(x):
    # numerically stable softplus
    return jnp.maximum(x, 0.0) + jnp.log1p(jnp.exp(-jnp.abs(x)))


# ===================== fused forward() + map_em() kernel =====================
def dirniw_map_em_kernel(data_ref, mask_ref, m_ref, v_raw_ref,
                         v_ref, pi_ref, musig_ref, *, num_iters, tau):
    data = data_ref[...]              # (B, N, d) f32
    mask_t = mask_ref[...]            # (B, 1, N) f32
    m = m_ref[...]                    # (p, d)

    # ---- forward(): V = softplus(V_)  (fused; emitted as an output) ----
    V = _softplus(v_raw_ref[...])     # (p, d)
    v_ref[...] = V

    bsz, n, d = data.shape
    p = m.shape[0]

    # ---- loop-invariant terms (hoisted out of the unrolled EM loop) ----
    data_sq = data * data                                              # (B, N, d)
    m_tau = jnp.broadcast_to((m * tau)[None], (bsz, p, d))             # (B, p, d)
    vm2_tau = jnp.broadcast_to(((V + m * m) * tau)[None], (bsz, p, d)) # (B, p, d)
    const = -0.5 * d * LOG_2PI

    # ---- mode of the prior (initial mixture state) ----
    pi = jnp.full((bsz, p, 1), 1.0 / p, dtype=jnp.float32)             # (B, p, 1)
    mu = jnp.broadcast_to(m[None], (bsz, p, d))                        # (B, p, d)
    Sigma = jnp.broadcast_to(V[None], (bsz, p, d))                     # (B, p, d)

    for _ in range(num_iters):        # static unroll (num_iters = 3)
        # ---------------- E step: mog_eval ----------------
        log_pi = jnp.log(pi)                                           # (B, p, 1)
        inv_sigma = pl.reciprocal(Sigma)                               # (B, p, d) EUP
        mu_inv = mu * inv_sigma
        quad = jnp.einsum('bpd,bnd->bpn', inv_sigma, data_sq,
                          preferred_element_type=jnp.float32)          # (B, p, N)
        cross = jnp.einsum('bpd,bnd->bpn', mu_inv, data,
                           preferred_element_type=jnp.float32)         # (B, p, N)
        log_det = jnp.sum(jnp.log(Sigma), axis=-1, keepdims=True)      # (B, p, 1)
        mahal = jnp.sum(mu * mu_inv, axis=-1, keepdims=True)           # (B, p, 1)
        jll = const - 0.5 * (log_det + mahal + quad) + cross + log_pi  # (B, p, N)
        # logsumexp over components (sublane axis), then responsibilities
        mx = jnp.max(jll, axis=1, keepdims=True)                       # (B, 1, N)
        mll = mx + jnp.log(jnp.sum(jnp.exp(jll - mx), axis=1, keepdims=True))
        qq = jnp.exp(jll - mll) * mask_t                               # (B, p, N)

        # ---------------- M step: map_m_step ----------------
        wsum_reg = jnp.sum(qq, axis=-1, keepdims=True) + tau           # (B, p, 1)
        wxsum = jnp.einsum('bpn,bnd->bpd', qq, data,
                           preferred_element_type=jnp.float32)         # (B, p, d)
        wxxsum = jnp.einsum('bpn,bnd->bpd', qq, data_sq,
                            preferred_element_type=jnp.float32)        # (B, p, d)
        inv_reg = pl.reciprocal(wsum_reg)                              # (B, p, 1) EUP
        pi = wsum_reg * pl.reciprocal(
            jnp.sum(wsum_reg, axis=1, keepdims=True))                  # (B, p, 1)
        mu = (wxsum + m_tau) * inv_reg
        # NOTE: matches the PyTorch reference exactly — no positivity clamp on Sigma.
        Sigma = (wxxsum + vm2_tau) * inv_reg - mu * mu

    pi_ref[...] = pi
    musig_ref[...] = jnp.stack([mu, Sigma], axis=1)                    # (B, 2, p, d)


def dirniw_map_em(data, mask, m, v_raw, *, num_iters=NUM_ITERS, tau=TAU):
    """Fused DirNIWNet.forward() + DirNIWNet.map_em() -> (V, pi, mu, Sigma)."""
    bsz, n, d = data.shape
    p = m.shape[0]
    data = data.astype(jnp.float32)
    mask_t = mask.reshape(bsz, 1, n).astype(jnp.float32)   # (B, 1, N), plain XLA

    kernel = functools.partial(dirniw_map_em_kernel,
                               num_iters=num_iters, tau=float(tau))
    out_shapes = (
        jax.ShapeDtypeStruct((p, d), jnp.float32),          # V = softplus(V_)
        jax.ShapeDtypeStruct((bsz, p, 1), jnp.float32),     # pi
        jax.ShapeDtypeStruct((bsz, 2, p, d), jnp.float32),  # [mu ; Sigma] packed
    )
    # Whole (tiny) problem in a single grid step: everything fits trivially in VMEM,
    # so the grid loop would be pure per-step overhead.  For large B, tile the batch
    # with grid=(cdiv(B, Bblk),) instead.
    V, pi3, musig = pl.pallas_call(
        kernel,
        out_shape=out_shapes,
        grid=(1,),
        in_specs=[
            pl.BlockSpec((bsz, n, d), lambda i: (0, 0, 0)),
            pl.BlockSpec((bsz, 1, n), lambda i: (0, 0, 0)),
            pl.BlockSpec((p, d), lambda i: (0, 0)),
            pl.BlockSpec((p, d), lambda i: (0, 0)),
        ],
        out_specs=(
            pl.BlockSpec((p, d), lambda i: (0, 0)),
            pl.BlockSpec((bsz, p, 1), lambda i: (0, 0, 0)),
            pl.BlockSpec((bsz, 2, p, d), lambda i: (0, 0, 0, 0)),
        ),
        compiler_params=pltpu.CompilerParams(
            dimension_semantics=("arbitrary",)),
    )(data, mask_t, m, v_raw)

    pi = pi3[:, :, 0]
    mu = musig[:, 0]
    Sigma = musig[:, 1]
    return V, pi, mu, Sigma


# ============================ pure-JAX references ============================
def ref_map_em(data, mask, m, V, num_iters=NUM_ITERS, tau=TAU):
    bsz, n, d = data.shape
    p = m.shape[0]
    pi = jnp.full((bsz, p), 1.0 / p, dtype=jnp.float32)
    mu = jnp.broadcast_to(m, (bsz, p, d))
    Sigma = jnp.broadcast_to(V, (bsz, p, d))
    for _ in range(num_iters):
        inv_s = 1.0 / Sigma
        jll = -0.5 * (d * LOG_2PI
                      + jnp.sum(jnp.log(Sigma), -1)[:, None, :]
                      + jnp.einsum('bnd,bpd->bnp', data ** 2, inv_s)
                      + jnp.sum(mu ** 2 * inv_s, -1)[:, None, :]
                      - 2.0 * jnp.einsum('bnd,bpd->bnp', data, mu * inv_s)
                      ) + jnp.log(pi)[:, None, :]
        mll = jax.scipy.special.logsumexp(jll, -1)
        qq = jnp.exp(jll - mll[..., None]) * mask[..., None]
        wsum = qq.sum(1)
        wsum_reg = wsum + tau
        wxsum = jnp.einsum('bnp,bnd->bpd', qq, data)
        wxxsum = jnp.einsum('bnp,bnd->bpd', qq, data ** 2)
        pi = wsum_reg / wsum_reg.sum(1, keepdims=True)
        mu = (wxsum + m[None] * tau) / wsum_reg[..., None]
        Sigma = (wxxsum + (V + m ** 2)[None] * tau) / wsum_reg[..., None] - mu ** 2
    return pi, mu, Sigma


# ==================================== main ====================================
if __name__ == "__main__":
    key = jax.random.PRNGKey(0)
    k_m, k_v, k_x = jax.random.split(key, 3)

    # deterministic parameter init (matches DirNIWNet.__init__ shapes/statistics)
    m_param = 0.1 * jax.random.normal(k_m, (P, D), dtype=jnp.float32)
    v_raw = (float(np.log(np.exp(1.0) - 1.0))
             + (0.001 / np.sqrt(D)) * jax.random.normal(k_v, (P, D), dtype=jnp.float32)
             ).astype(jnp.float32)

    data = 0.5 * jax.random.normal(k_x, (B, N, D), dtype=jnp.float32)
    mask = jnp.ones((B, N), dtype=jnp.float32)

    # single fused kernel: forward() (V = softplus(V_)) + map_em() EM loop
    V_out, pi_out, mu_out, sig_out = dirniw_map_em(data, mask, m_param, v_raw)
    jax.block_until_ready((V_out, pi_out, mu_out, sig_out))

    # references (plain JAX)
    V_ref = jax.nn.softplus(v_raw)
    pi_ref, mu_ref, sig_ref = ref_map_em(data, mask, m_param, V_ref)

    np.testing.assert_allclose(np.asarray(V_out), np.asarray(V_ref), rtol=1e-5, atol=1e-6)
    np.testing.assert_allclose(np.asarray(pi_out), np.asarray(pi_ref), rtol=1e-4, atol=1e-5)
    np.testing.assert_allclose(np.asarray(mu_out), np.asarray(mu_ref), rtol=1e-4, atol=1e-5)
    np.testing.assert_allclose(np.asarray(sig_out), np.asarray(sig_ref), rtol=1e-4, atol=1e-5)

    print("KERNEL_OK")
</pallas_src>

<mosaic_0001>
module attributes {stable_mosaic.version = 11 : i64} {
  func.func @dirniw_map_em_kernel(%arg0: i32, %arg1: memref<2x8x32xf32, #tpu.memory_space<vmem>>, %arg2: memref<2x1x8xf32, #tpu.memory_space<vmem>>, %arg3: memref<4x32xf32, #tpu.memory_space<vmem>>, %arg4: memref<4x32xf32, #tpu.memory_space<vmem>>, %arg5: memref<4x32xf32, #tpu.memory_space<vmem>>, %arg6: memref<2x4x1xf32, #tpu.memory_space<vmem>>, %arg7: memref<2x2x4x32xf32, #tpu.memory_space<vmem>>) attributes {dimension_semantics = [#tpu.dimension_semantics<arbitrary>], iteration_bounds = array<i64: 1>, scalar_prefetch = 0 : i64, scratch_operands = 0 : i64, tpu.core_type = #tpu.core_type<tc>, window_params = [{pipeline_mode = #tpu.pipeline_mode<synchronous>, transform_indices = @transform_0, window_bounds = array<i64: 2, 8, 32>}, {pipeline_mode = #tpu.pipeline_mode<synchronous>, transform_indices = @transform_1, window_bounds = array<i64: 2, 1, 8>}, {pipeline_mode = #tpu.pipeline_mode<synchronous>, transform_indices = @transform_2, window_bounds = array<i64: 4, 32>}, {pipeline_mode = #tpu.pipeline_mode<synchronous>, transform_indices = @transform_3, window_bounds = array<i64: 4, 32>}, {pipeline_mode = #tpu.pipeline_mode<synchronous>, transform_indices = @transform_4, window_bounds = array<i64: 4, 32>}, {pipeline_mode = #tpu.pipeline_mode<synchronous>, transform_indices = @transform_5, window_bounds = array<i64: 2, 4, 1>}, {pipeline_mode = #tpu.pipeline_mode<synchronous>, transform_indices = @transform_6, window_bounds = array<i64: 2, 2, 4, 32>}]} {
    %c0 = arith.constant 0 : index
    %c0_0 = arith.constant 0 : index
    %c0_1 = arith.constant 0 : index
    %0 = vector.load %arg1[%c0, %c0_0, %c0_1] : memref<2x8x32xf32, #tpu.memory_space<vmem>>, vector<2x8x32xf32>
    %c0_2 = arith.constant 0 : index
    %c0_3 = arith.constant 0 : index
    %c0_4 = arith.constant 0 : index
    %1 = vector.load %arg2[%c0_2, %c0_3, %c0_4] : memref<2x1x8xf32, #tpu.memory_space<vmem>>, vector<2x1x8xf32>
    %c0_5 = arith.constant 0 : index
    %c0_6 = arith.constant 0 : index
    %2 = vector.load %arg3[%c0_5, %c0_6] : memref<4x32xf32, #tpu.memory_space<vmem>>, vector<4x32xf32>
    %c0_7 = arith.constant 0 : index
    %c0_8 = arith.constant 0 : index
    %3 = vector.load %arg4[%c0_7, %c0_8] : memref<4x32xf32, #tpu.memory_space<vmem>>, vector<4x32xf32>
    %cst = arith.constant 0.000000e+00 : f32
    %4 = vector.broadcast %cst : f32 to vector<4x32xf32>
    %5 = arith.maximumf %3, %4 : vector<4x32xf32>
    %6 = math.absf %3 : vector<4x32xf32>
    %cst_9 = arith.constant 0.000000e+00 : f32
    %7 = vector.broadcast %cst_9 : f32 to vector<4x32xf32>
    %8 = arith.subf %7, %6 : vector<4x32xf32>
    %9 = math.exp %8 : vector<4x32xf32>
    %10 = math.log1p %9 : vector<4x32xf32>
    %11 = arith.addf %5, %10 : vector<4x32xf32>
    %c0_10 = arith.constant 0 : index
    %c0_11 = arith.constant 0 : index
    %12 = vector.load %arg5[%c0_10, %c0_11] : memref<4x32xf32, #tpu.memory_space<vmem>>, vector<4x32xf32>
    tpu.vector_store %arg5[%c0_10, %c0_11], %11 {strides = array<i32>} : memref<4x32xf32, #tpu.memory_space<vmem>>, vector<4x32xf32>,
    %13 = arith.mulf %0, %0 : vector<2x8x32xf32>
    %cst_12 = arith.constant 1.000000e+00 : f32
    %14 = vector.broadcast %cst_12 : f32 to vector<4x32xf32>
    %15 = arith.mulf %2, %14 : vector<4x32xf32>
    %16 = vector.shape_cast %15 : vector<4x32xf32> to vector<1x4x32xf32>
    %17 = vector.shape_cast %16 : vector<1x4x32xf32> to vector<1x4x32xf32>
    %18 = vector.broadcast %17 : vector<1x4x32xf32> to vector<2x4x32xf32>
    %19 = arith.mulf %2, %2 : vector<4x32xf32>
    %20 = arith.addf %11, %19 : vector<4x32xf32>
    %cst_13 = arith.constant 1.000000e+00 : f32
    %21 = vector.broadcast %cst_13 : f32 to vector<4x32xf32>
    %22 = arith.mulf %20, %21 : vector<4x32xf32>
    %23 = vector.shape_cast %22 : vector<4x32xf32> to vector<1x4x32xf32>
    %24 = vector.shape_cast %23 : vector<1x4x32xf32> to vector<1x4x32xf32>
    %25 = vector.broadcast %24 : vector<1x4x32xf32> to vector<2x4x32xf32>
    %cst_14 = arith.constant 2.500000e-01 : f32
    %26 = vector.broadcast %cst_14 : f32 to vector<2x4x1xf32>
    %27 = vector.shape_cast %2 : vector<4x32xf32> to vector<1x4x32xf32>
    %28 = vector.shape_cast %27 : vector<1x4x32xf32> to vector<1x4x32xf32>
    %29 = vector.broadcast %28 : vector<1x4x32xf32> to vector<2x4x32xf32>
    %30 = vector.shape_cast %11 : vector<4x32xf32> to vector<1x4x32xf32>
    %31 = vector.shape_cast %30 : vector<1x4x32xf32> to vector<1x4x32xf32>
    %32 = vector.broadcast %31 : vector<1x4x32xf32> to vector<2x4x32xf32>
    %33 = math.log %26 : vector<2x4x1xf32>
    %34 = tpu.reciprocal %32 : vector<2x4x32xf32> -> vector<2x4x32xf32>
    %35 = arith.mulf %29, %34 : vector<2x4x32xf32>
    "tpu.trace_start"() <{level = 10 : i32, message = "bpd,bnd->bpn"}> : () -> ()
    %cst_15 = arith.constant dense<0.000000e+00> : vector<2x4x8xf32>
    %36 = tpu.matmul %34, %13, %cst_15 {dimension_numbers = #tpu.dot_dimension_numbers<[2], [2], [1], [1], [0, 0, 0, 1, 1, 1], [0], [0]>} : vector<2x4x32xf32>, vector<2x8x32xf32>, vector<2x4x8xf32> -> vector<2x4x8xf32>
    %cst_16 = arith.constant dense<0.000000e+00> : vector<2x4x8xf32>
    %37 = tpu.matmul %35, %0, %cst_16 {dimension_numbers = #tpu.dot_dimension_numbers<[2], [2], [1], [1], [0, 0, 0, 1, 1, 1], [0], [0]>} : vector<2x4x32xf32>, vector<2x8x32xf32>, vector<2x4x8xf32> -> vector<2x4x8xf32>
    "tpu.trace_stop"() : () -> ()
    %38 = math.log %32 : vector<2x4x32xf32>
    %cst_17 = arith.constant dense<0.000000e+00> : vector<2x4xf32>
    %39 = vector.multi_reduction <add>, %38, %cst_17 [2] : vector<2x4x32xf32> to vector<2x4xf32>
    %40 = vector.shape_cast %39 : vector<2x4xf32> to vector<2x4x1xf32>
    %41 = arith.mulf %29, %35 : vector<2x4x32xf32>
    %cst_18 = arith.constant dense<0.000000e+00> : vector<2x4xf32>
    %42 = vector.multi_reduction <add>, %41, %cst_18 [2] : vector<2x4x32xf32> to vector<2x4xf32>
    %43 = vector.shape_cast %42 : vector<2x4xf32> to vector<2x4x1xf32>
    %44 = arith.addf %40, %43 : vector<2x4x1xf32>
    %45 = vector.broadcast %44 : vector<2x4x1xf32> to vector<2x4x8xf32>
    %46 = arith.addf %45, %36 : vector<2x4x8xf32>
    %cst_19 = arith.constant 5.000000e-01 : f32
    %47 = vector.broadcast %cst_19 : f32 to vector<2x4x8xf32>
    %48 = arith.mulf %47, %46 : vector<2x4x8xf32>
    %cst_20 = arith.constant -29.4060326 : f32
    %49 = vector.broadcast %cst_20 : f32 to vector<2x4x8xf32>
    %50 = arith.subf %49, %48 : vector<2x4x8xf32>
    %51 = arith.addf %50, %37 : vector<2x4x8xf32>
    %52 = vector.broadcast %33 : vector<2x4x1xf32> to vector<2x4x8xf32>
    %53 = arith.addf %51, %52 : vector<2x4x8xf32>
    %cst_21 = arith.constant dense<0xFF800000> : vector<2x8xf32>
    %54 = vector.multi_reduction <maximumf>, %53, %cst_21 [1] : vector<2x4x8xf32> to vector<2x8xf32>
    %55 = vector.shape_cast %54 : vector<2x8xf32> to vector<2x1x8xf32>
    %56 = vector.broadcast %55 : vector<2x1x8xf32> to vector<2x4x8xf32>
    %57 = arith.subf %53, %56 : vector<2x4x8xf32>
    %58 = math.exp %57 : vector<2x4x8xf32>
    %cst_22 = arith.constant dense<0.000000e+00> : vector<2x8xf32>
    %59 = vector.multi_reduction <add>, %58, %cst_22 [1] : vector<2x4x8xf32> to vector<2x8xf32>
    %60 = vector.shape_cast %59 : vector<2x8xf32> to vector<2x1x8xf32>
    %61 = math.log %60 : vector<2x1x8xf32>
    %62 = arith.addf %55, %61 : vector<2x1x8xf32>
    %63 = vector.broadcast %62 : vector<2x1x8xf32> to vector<2x4x8xf32>
    %64 = arith.subf %53, %63 : vector<2x4x8xf32>
    %65 = math.exp %64 : vector<2x4x8xf32>
    %66 = vector.broadcast %1 : vector<2x1x8xf32> to vector<2x4x8xf32>
    %67 = arith.mulf %65, %66 : vector<2x4x8xf32>
    %cst_23 = arith.constant dense<0.000000e+00> : vector<2x4xf32>
    %68 = vector.multi_reduction <add>, %67, %cst_23 [2] : vector<2x4x8xf32> to vector<2x4xf32>
    %69 = vector.shape_cast %68 : vector<2x4xf32> to vector<2x4x1xf32>
    %cst_24 = arith.constant 1.000000e+00 : f32
    %70 = vector.broadcast %cst_24 : f32 to vector<2x4x1xf32>
    %71 = arith.addf %69, %70 : vector<2x4x1xf32>
    "tpu.trace_start"() <{level = 10 : i32, message = "bpn,bnd->bpd"}> : () -> ()
    %cst_25 = arith.constant dense<0.000000e+00> : vector<2x4x32xf32>
    %72 = tpu.matmul %67, %0, %cst_25 {dimension_numbers = #tpu.dot_dimension_numbers<[2], [1], [1], [2], [0, 0, 0, 1, 1, 2], [0], [0]>} : vector<2x4x8xf32>, vector<2x8x32xf32>, vector<2x4x32xf32> -> vector<2x4x32xf32>
    %cst_26 = arith.constant dense<0.000000e+00> : vector<2x4x32xf32>
    %73 = tpu.matmul %67, %13, %cst_26 {dimension_numbers = #tpu.dot_dimension_numbers<[2], [1], [1], [2], [0, 0, 0, 1, 1, 2], [0], [0]>} : vector<2x4x8xf32>, vector<2x8x32xf32>, vector<2x4x32xf32> -> vector<2x4x32xf32>
    "tpu.trace_stop"() : () -> ()
    %74 = tpu.reciprocal %71 : vector<2x4x1xf32> -> vector<2x4x1xf32>
    %cst_27 = arith.constant dense<0.000000e+00> : vector<2x1xf32>
    %75 = vector.multi_reduction <add>, %71, %cst_27 [1] : vector<2x4x1xf32> to vector<2x1xf32>
    %76 = vector.shape_cast %75 : vector<2x1xf32> to vector<2x1x1xf32>
    %77 = tpu.reciprocal %76 : vector<2x1x1xf32> -> vector<2x1x1xf32>
    %78 = vector.broadcast %77 : vector<2x1x1xf32> to vector<2x4x1xf32>
    %79 = arith.mulf %71, %78 : vector<2x4x1xf32>
    %80 = arith.addf %72, %18 : vector<2x4x32xf32>
    %81 = vector.broadcast %74 : vector<2x4x1xf32> to vector<2x4x32xf32>
    %82 = arith.mulf %80, %81 : vector<2x4x32xf32>
    %83 = arith.addf %73, %25 : vector<2x4x32xf32>
    %84 = vector.broadcast %74 : vector<2x4x1xf32> to vector<2x4x32xf32>
    %85 = arith.mulf %83, %84 : vector<2x4x32xf32>
    %86 = arith.mulf %82, %82 : vector<2x4x32xf32>
    %87 = arith.subf %85, %86 : vector<2x4x32xf32>
    %88 = math.log %79 : vector<2x4x1xf32>
    %89 = tpu.reciprocal %87 : vector<2x4x32xf32> -> vector<2x4x32xf32>
    %90 = arith.mulf %82, %89 : vector<2x4x32xf32>
    "tpu.trace_start"() <{level = 10 : i32, message = "bpd,bnd->bpn"}> : () -> ()
    %cst_28 = arith.constant dense<0.000000e+00> : vector<2x4x8xf32>
    %91 = tpu.matmul %89, %13, %cst_28 {dimension_numbers = #tpu.dot_dimension_numbers<[2], [2], [1], [1], [0, 0, 0, 1, 1, 1], [0], [0]>} : vector<2x4x32xf32>, vector<2x8x32xf32>, vector<2x4x8xf32> -> vector<2x4x8xf32>
    %cst_29 = arith.constant dense<0.000000e+00> : vector<2x4x8xf32>
    %92 = tpu.matmul %90, %0, %cst_29 {dimension_numbers = #tpu.dot_dimension_numbers<[2], [2], [1], [1], [0, 0, 0, 1, 1, 1], [0], [0]>} : vector<2x4x32xf32>, vector<2x8x32xf32>, vector<2x4x8xf32> -> vector<2x4x8xf32>
    "tpu.trace_stop"() : () -> ()
    %93 = math.log %87 : vector<2x4x32xf32>
    %cst_30 = arith.constant dense<0.000000e+00> : vector<2x4xf32>
    %94 = vector.multi_reduction <add>, %93, %cst_30 [2] : vector<2x4x32xf32> to vector<2x4xf32>
    %95 = vector.shape_cast %94 : vector<2x4xf32> to vector<2x4x1xf32>
    %96 = arith.mulf %82, %90 : vector<2x4x32xf32>
    %cst_31 = arith.constant dense<0.000000e+00> : vector<2x4xf32>
    %97 = vector.multi_reduction <add>, %96, %cst_31 [2] : vector<2x4x32xf32> to vector<2x4xf32>
    %98 = vector.shape_cast %97 : vector<2x4xf32> to vector<2x4x1xf32>
    %99 = arith.addf %95, %98 : vector<2x4x1xf32>
    %100 = vector.broadcast %99 : vector<2x4x1xf32> to vector<2x4x8xf32>
    %101 = arith.addf %100, %91 : vector<2x4x8xf32>
    %cst_32 = arith.constant 5.000000e-01 : f32
    %102 = vector.broadcast %cst_32 : f32 to vector<2x4x8xf32>
    %103 = arith.mulf %102, %101 : vector<2x4x8xf32>
    %cst_33 = arith.constant -29.4060326 : f32
    %104 = vector.broadcast %cst_33 : f32 to vector<2x4x8xf32>
    %105 = arith.subf %104, %103 : vector<2x4x8xf32>
    %106 = arith.addf %105, %92 : vector<2x4x8xf32>
    %107 = vector.broadcast %88 : vector<2x4x1xf32> to vector<2x4x8xf32>
    %108 = arith.addf %106, %107 : vector<2x4x8xf32>
    %cst_34 = arith.constant dense<0xFF800000> : vector<2x8xf32>
    %109 = vector.multi_reduction <maximumf>, %108, %cst_34 [1] : vector<2x4x8xf32> to vector<2x8xf32>
    %110 = vector.shape_cast %109 : vector<2x8xf32> to vector<2x1x8xf32>
    %111 = vector.broadcast %110 : vector<2x1x8xf32> to vector<2x4x8xf32>
    %112 = arith.subf %108, %111 : vector<2x4x8xf32>
    %113 = math.exp %112 : vector<2x4x8xf32>
    %cst_35 = arith.constant dense<0.000000e+00> : vector<2x8xf32>
    %114 = vector.multi_reduction <add>, %113, %cst_35 [1] : vector<2x4x8xf32> to vector<2x8xf32>
    %115 = vector.shape_cast %114 : vector<2x8xf32> to vector<2x1x8xf32>
    %116 = math.log %115 : vector<2x1x8xf32>
    %117 = arith.addf %110, %116 : vector<2x1x8xf32>
    %118 = vector.broadcast %117 : vector<2x1x8xf32> to vector<2x4x8xf32>
    %119 = arith.subf %108, %118 : vector<2x4x8xf32>
    %120 = math.exp %119 : vector<2x4x8xf32>
    %121 = vector.broadcast %1 : vector<2x1x8xf32> to vector<2x4x8xf32>
    %122 = arith.mulf %120, %121 : vector<2x4x8xf32>
    %cst_36 = arith.constant dense<0.000000e+00> : vector<2x4xf32>
    %123 = vector.multi_reduction <add>, %122, %cst_36 [2] : vector<2x4x8xf32> to vector<2x4xf32>
    %124 = vector.shape_cast %123 : vector<2x4xf32> to vector<2x4x1xf32>
    %cst_37 = arith.constant 1.000000e+00 : f32
    %125 = vector.broadcast %cst_37 : f32 to vector<2x4x1xf32>
    %126 = arith.addf %124, %125 : vector<2x4x1xf32>
    "tpu.trace_start"() <{level = 10 : i32, message = "bpn,bnd->bpd"}> : () -> ()
    %cst_38 = arith.constant dense<0.000000e+00> : vector<2x4x32xf32>
    %127 = tpu.matmul %122, %0, %cst_38 {dimension_numbers = #tpu.dot_dimension_numbers<[2], [1], [1], [2], [0, 0, 0, 1, 1, 2], [0], [0]>} : vector<2x4x8xf32>, vector<2x8x32xf32>, vector<2x4x32xf32> -> vector<2x4x32xf32>
    %cst_39 = arith.constant dense<0.000000e+00> : vector<2x4x32xf32>
    %128 = tpu.matmul %122, %13, %cst_39 {dimension_numbers = #tpu.dot_dimension_numbers<[2], [1], [1], [2], [0, 0, 0, 1, 1, 2], [0], [0]>} : vector<2x4x8xf32>, vector<2x8x32xf32>, vector<2x4x32xf32> -> vector<2x4x32xf32>
    "tpu.trace_stop"() : () -> ()
    %129 = tpu.reciprocal %126 : vector<2x4x1xf32> -> vector<2x4x1xf32>
    %cst_40 = arith.constant dense<0.000000e+00> : vector<2x1xf32>
    %130 = vector.multi_reduction <add>, %126, %cst_40 [1] : vector<2x4x1xf32> to vector<2x1xf32>
    %131 = vector.shape_cast %130 : vector<2x1xf32> to vector<2x1x1xf32>
    %132 = tpu.reciprocal %131 : vector<2x1x1xf32> -> vector<2x1x1xf32>
    %133 = vector.broadcast %132 : vector<2x1x1xf32> to vector<2x4x1xf32>
    %134 = arith.mulf %126, %133 : vector<2x4x1xf32>
    %135 = arith.addf %127, %18 : vector<2x4x32xf32>
    %136 = vector.broadcast %129 : vector<2x4x1xf32> to vector<2x4x32xf32>
    %137 = arith.mulf %135, %136 : vector<2x4x32xf32>
    %138 = arith.addf %128, %25 : vector<2x4x32xf32>
    %139 = vector.broadcast %129 : vector<2x4x1xf32> to vector<2x4x32xf32>
    %140 = arith.mulf %138, %139 : vector<2x4x32xf32>
    %141 = arith.mulf %137, %137 : vector<2x4x32xf32>
    %142 = arith.subf %140, %141 : vector<2x4x32xf32>
    %143 = math.log %134 : vector<2x4x1xf32>
    %144 = tpu.reciprocal %142 : vector<2x4x32xf32> -> vector<2x4x32xf32>
    %145 = arith.mulf %137, %144 : vector<2x4x32xf32>
    "tpu.trace_start"() <{level = 10 : i32, message = "bpd,bnd->bpn"}> : () -> ()
    %cst_41 = arith.constant dense<0.000000e+00> : vector<2x4x8xf32>
    %146 = tpu.matmul %144, %13, %cst_41 {dimension_numbers = #tpu.dot_dimension_numbers<[2], [2], [1], [1], [0, 0, 0, 1, 1, 1], [0], [0]>} : vector<2x4x32xf32>, vector<2x8x32xf32>, vector<2x4x8xf32> -> vector<2x4x8xf32>
    %cst_42 = arith.constant dense<0.000000e+00> : vector<2x4x8xf32>
    %147 = tpu.matmul %145, %0, %cst_42 {dimension_numbers = #tpu.dot_dimension_numbers<[2], [2], [1], [1], [0, 0, 0, 1, 1, 1], [0], [0]>} : vector<2x4x32xf32>, vector<2x8x32xf32>, vector<2x4x8xf32> -> vector<2x4x8xf32>
    "tpu.trace_stop"() : () -> ()
    %148 = math.log %142 : vector<2x4x32xf32>
    %cst_43 = arith.constant dense<0.000000e+00> : vector<2x4xf32>
    %149 = vector.multi_reduction <add>, %148, %cst_43 [2] : vector<2x4x32xf32> to vector<2x4xf32>
    %150 = vector.shape_cast %149 : vector<2x4xf32> to vector<2x4x1xf32>
    %151 = arith.mulf %137, %145 : vector<2x4x32xf32>
    %cst_44 = arith.constant dense<0.000000e+00> : vector<2x4xf32>
    %152 = vector.multi_reduction <add>, %151, %cst_44 [2] : vector<2x4x32xf32> to vector<2x4xf32>
    %153 = vector.shape_cast %152 : vector<2x4xf32> to vector<2x4x1xf32>
    %154 = arith.addf %150, %153 : vector<2x4x1xf32>
    %155 = vector.broadcast %154 : vector<2x4x1xf32> to vector<2x4x8xf32>
    %156 = arith.addf %155, %146 : vector<2x4x8xf32>
    %cst_45 = arith.constant 5.000000e-01 : f32
    %157 = vector.broadcast %cst_45 : f32 to vector<2x4x8xf32>
    %158 = arith.mulf %157, %156 : vector<2x4x8xf32>
    %cst_46 = arith.constant -29.4060326 : f32
    %159 = vector.broadcast %cst_46 : f32 to vector<2x4x8xf32>
    %160 = arith.subf %159, %158 : vector<2x4x8xf32>
    %161 = arith.addf %160, %147 : vector<2x4x8xf32>
    %162 = vector.broadcast %143 : vector<2x4x1xf32> to vector<2x4x8xf32>
    %163 = arith.addf %161, %162 : vector<2x4x8xf32>
    %cst_47 = arith.constant dense<0xFF800000> : vector<2x8xf32>
    %164 = vector.multi_reduction <maximumf>, %163, %cst_47 [1] : vector<2x4x8xf32> to vector<2x8xf32>
    %165 = vector.shape_cast %164 : vector<2x8xf32> to vector<2x1x8xf32>
    %166 = vector.broadcast %165 : vector<2x1x8xf32> to vector<2x4x8xf32>
    %167 = arith.subf %163, %166 : vector<2x4x8xf32>
    %168 = math.exp %167 : vector<2x4x8xf32>
    %cst_48 = arith.constant dense<0.000000e+00> : vector<2x8xf32>
    %169 = vector.multi_reduction <add>, %168, %cst_48 [1] : vector<2x4x8xf32> to vector<2x8xf32>
    %170 = vector.shape_cast %169 : vector<2x8xf32> to vector<2x1x8xf32>
    %171 = math.log %170 : vector<2x1x8xf32>
    %172 = arith.addf %165, %171 : vector<2x1x8xf32>
    %173 = vector.broadcast %172 : vector<2x1x8xf32> to vector<2x4x8xf32>
    %174 = arith.subf %163, %173 : vector<2x4x8xf32>
    %175 = math.exp %174 : vector<2x4x8xf32>
    %176 = vector.broadcast %1 : vector<2x1x8xf32> to vector<2x4x8xf32>
    %177 = arith.mulf %175, %176 : vector<2x4x8xf32>
    %cst_49 = arith.constant dense<0.000000e+00> : vector<2x4xf32>
    %178 = vector.multi_reduction <add>, %177, %cst_49 [2] : vector<2x4x8xf32> to vector<2x4xf32>
    %179 = vector.shape_cast %178 : vector<2x4xf32> to vector<2x4x1xf32>
    %cst_50 = arith.constant 1.000000e+00 : f32
    %180 = vector.broadcast %cst_50 : f32 to vector<2x4x1xf32>
    %181 = arith.addf %179, %180 : vector<2x4x1xf32>
    "tpu.trace_start"() <{level = 10 : i32, message = "bpn,bnd->bpd"}> : () -> ()
    %cst_51 = arith.constant dense<0.000000e+00> : vector<2x4x32xf32>
    %182 = tpu.matmul %177, %0, %cst_51 {dimension_numbers = #tpu.dot_dimension_numbers<[2], [1], [1], [2], [0, 0, 0, 1, 1, 2], [0], [0]>} : vector<2x4x8xf32>, vector<2x8x32xf32>, vector<2x4x32xf32> -> vector<2x4x32xf32>
    %cst_52 = arith.constant dense<0.000000e+00> : vector<2x4x32xf32>
    %183 = tpu.matmul %177, %13, %cst_52 {dimension_numbers = #tpu.dot_dimension_numbers<[2], [1], [1], [2], [0, 0, 0, 1, 1, 2], [0], [0]>} : vector<2x4x8xf32>, vector<2x8x32xf32>, vector<2x4x32xf32> -> vector<2x4x32xf32>
    "tpu.trace_stop"() : () -> ()
    %184 = tpu.reciprocal %181 : vector<2x4x1xf32> -> vector<2x4x1xf32>
    %cst_53 = arith.constant dense<0.000000e+00> : vector<2x1xf32>
    %185 = vector.multi_reduction <add>, %181, %cst_53 [1] : vector<2x4x1xf32> to vector<2x1xf32>
    %186 = vector.shape_cast %185 : vector<2x1xf32> to vector<2x1x1xf32>
    %187 = tpu.reciprocal %186 : vector<2x1x1xf32> -> vector<2x1x1xf32>
    %188 = vector.broadcast %187 : vector<2x1x1xf32> to vector<2x4x1xf32>
    %189 = arith.mulf %181, %188 : vector<2x4x1xf32>
    %190 = arith.addf %182, %18 : vector<2x4x32xf32>
    %191 = vector.broadcast %184 : vector<2x4x1xf32> to vector<2x4x32xf32>
    %192 = arith.mulf %190, %191 : vector<2x4x32xf32>
    %193 = arith.addf %183, %25 : vector<2x4x32xf32>
    %194 = vector.broadcast %184 : vector<2x4x1xf32> to vector<2x4x32xf32>
    %195 = arith.mulf %193, %194 : vector<2x4x32xf32>
    %196 = arith.mulf %192, %192 : vector<2x4x32xf32>
    %197 = arith.subf %195, %196 : vector<2x4x32xf32>
    %c0_54 = arith.constant 0 : index
    %c0_55 = arith.constant 0 : index
    %c0_56 = arith.constant 0 : index
    %198 = vector.load %arg6[%c0_54, %c0_55, %c0_56] : memref<2x4x1xf32, #tpu.memory_space<vmem>>, vector<2x4x1xf32>
    tpu.vector_store %arg6[%c0_54, %c0_55, %c0_56], %189 {strides = array<i32>} : memref<2x4x1xf32, #tpu.memory_space<vmem>>, vector<2x4x1xf32>,
    %199 = vector.shape_cast %192 : vector<2x4x32xf32> to vector<2x1x4x32xf32>
    %200 = vector.shape_cast %197 : vector<2x4x32xf32> to vector<2x1x4x32xf32>
    %201 = tpu.concatenate %199, %200 in 1 : vector<2x1x4x32xf32>, vector<2x1x4x32xf32> -> vector<2x2x4x32xf32>
    %c0_57 = arith.constant 0 : index
    %c0_58 = arith.constant 0 : index
    %c0_59 = arith.constant 0 : index
    %c0_60 = arith.constant 0 : index
    %202 = vector.load %arg7[%c0_57, %c0_58, %c0_59, %c0_60] : memref<2x2x4x32xf32, #tpu.memory_space<vmem>>, vector<2x2x4x32xf32>
    tpu.vector_store %arg7[%c0_57, %c0_58, %c0_59, %c0_60], %201 {strides = array<i32>} : memref<2x2x4x32xf32, #tpu.memory_space<vmem>>, vector<2x2x4x32xf32>,
    return
  }
  func.func @transform_0(%arg0: i32) -> (i32, i32, i32) {
    %c0_i32 = arith.constant 0 : i32
    %c0_i32_0 = arith.constant 0 : i32
    %c0_i32_1 = arith.constant 0 : i32
    %c0_i32_2 = arith.constant 0 : i32
    return %c0_i32, %c0_i32_0, %c0_i32_1 : i32, i32, i32
  }
  func.func @transform_1(%arg0: i32) -> (i32, i32, i32) {
    %c0_i32 = arith.constant 0 : i32
    %c0_i32_0 = arith.constant 0 : i32
    %c0_i32_1 = arith.constant 0 : i32
    %c0_i32_2 = arith.constant 0 : i32
    return %c0_i32, %c0_i32_0, %c0_i32_1 : i32, i32, i32
  }
  func.func @transform_2(%arg0: i32) -> (i32, i32) {
    %c0_i32 = arith.constant 0 : i32
    %c0_i32_0 = arith.constant 0 : i32
    %c0_i32_1 = arith.constant 0 : i32
    return %c0_i32, %c0_i32_0 : i32, i32
  }
  func.func @transform_3(%arg0: i32) -> (i32, i32) {
    %c0_i32 = arith.constant 0 : i32
    %c0_i32_0 = arith.constant 0 : i32
    %c0_i32_1 = arith.constant 0 : i32
    return %c0_i32, %c0_i32_0 : i32, i32
  }
  func.func @transform_4(%arg0: i32) -> (i32, i32) {
    %c0_i32 = arith.constant 0 : i32
    %c0_i32_0 = arith.constant 0 : i32
    %c0_i32_1 = arith.constant 0 : i32
    return %c0_i32, %c0_i32_0 : i32, i32
  }
  func.func @transform_5(%arg0: i32) -> (i32, i32, i32) {
    %c0_i32 = arith.constant 0 : i32
    %c0_i32_0 = arith.constant 0 : i32
    %c0_i32_1 = arith.constant 0 : i32
    %c0_i32_2 = arith.constant 0 : i32
    return %c0_i32, %c0_i32_0, %c0_i32_1 : i32, i32, i32
  }
  func.func @transform_6(%arg0: i32) -> (i32, i32, i32, i32) {
    %c0_i32 = arith.constant 0 : i32
    %c0_i32_0 = arith.constant 0 : i32
    %c0_i32_1 = arith.constant 0 : i32
    %c0_i32_2 = arith.constant 0 : i32
    %c0_i32_3 = arith.constant 0 : i32
    return %c0_i32, %c0_i32_0, %c0_i32_1, %c0_i32_2 : i32, i32, i32, i32
  }
}

</mosaic_0001>

<llo_original>
// kernel: tpu_custom_call.1
$region0: #{tpu_custom_call.1}
  #allocation0 [shape = 'u32[]', space=smem, size = 0x4, offset = 0x4, fixed_abs, tag = 'smem constant byte address 0x4 - core index']
  #allocation1 [shape = 'u32[72,128]{1,0:T(1,128)}', space=vmem, size = 0x9000, scoped, tag = 'internal scratch']
  %s0 = inlined_call_operand.hbm [shape: f32[2,8,32], index: 0, kind: input, shape index: {}]
  %s1 = inlined_call_operand.hbm [shape: f32[2,1,8], index: 1, kind: input, shape index: {}]
  %s2 = inlined_call_operand.hbm [shape: f32[4,32], index: 2, kind: input, shape index: {}]
  %s3 = inlined_call_operand.hbm [shape: f32[4,32], index: 3, kind: input, shape index: {}]
  %s4 = inlined_call_operand.hbm [shape: f32[4,32], index: 4, kind: output, shape index: {0}]
  %s5 = inlined_call_operand.vmem [shape: f32[2,4,1], index: 5, kind: output, shape index: {1}]
  %s6 = inlined_call_operand.hbm [shape: f32[2,2,4,32], index: 6, kind: output, shape index: {2}]
  %7 = xla_tuple %s4, %s5, %s6
  %s8 = sld [smem:[#allocation0]]
  $region58: #{tpu_custom_call.1} parent=0
    _
  %s10 = ssub.s32 1, %s8
  %s11 = scalar_select 0, %s10, %s8
  $region1: #{tpu_custom_call.1} parent=0
    #allocation2 [shape = 'u8[8192]{0}', space=vmem, size = 0x2000, scoped, tag = 'input window, operand 0, single buffered']
    #allocation3 [shape = 's32[1]{0}', space=sflag, size = 0x4, scoped, tag = 'scoped memory for tpu_custom_call.1']
    #allocation4 [shape = 's32[1]{0}', space=sflag, size = 0x4, scoped, tag = 'scoped memory for tpu_custom_call.1']
    #allocation5 [shape = 'u8[1024]{0}', space=vmem, size = 0x400, scoped, tag = 'input window, operand 1, single buffered']
    #allocation6 [shape = 's32[1]{0}', space=sflag, size = 0x4, scoped, tag = 'scoped memory for tpu_custom_call.1']
    #allocation7 [shape = 'u8[2048]{0}', space=vmem, size = 0x800, scoped, tag = 'input window, operand 2, single buffered']
    #allocation8 [shape = 'u8[2048]{0}', space=vmem, size = 0x800, scoped, tag = 'input window, operand 3, single buffered']
    #allocation9 [shape = 's32[1]{0}', space=sflag, size = 0x4, scoped, tag = 'scoped memory for tpu_custom_call.1']
    #allocation10 [shape = 'u8[2048]{0}', space=vmem, size = 0x800, scoped, tag = 'output window, operand 0, single buffered']
    #allocation11 [shape = 'u8[8192]{0}', space=vmem, size = 0x2000, scoped, tag = 'output window, operand 2, single buffered']
    #allocation12 [shape = 's32[1]{0}', space=sflag, size = 0x4, scoped, tag = 'scoped memory for tpu_custom_call.1']
    %12 = vsyncpa [#allocation3], 0
    %13 = vsyncpa [#allocation6], 0
    %14 = vsyncpa [#allocation9], 0
    %15 = vsyncpa [#allocation4], 0
    %16 = vsyncpa [#allocation12], 0
    // Predicated region
    $region2: #{tpu_custom_call.1} parent=1 // pred_check
      _
    $region3: #{tpu_custom_call.1} parent=1 // pred_check_branch
      %18 = sbr.rel (0) target = $region5
    $region4: #{tpu_custom_call.1} parent=1 // pred_region
      %20 = vsyncadd [#allocation3], 0
      %s21 = sshll.u32 %s0, 4
      %s22 = int_to_ptr.hbm [resolvable:$true] %s21
      %s23 = sshll.u32 [#allocation2], 4
      %s24 = int_to_ptr.vmem [resolvable:$true] %s23
      %29 = dma.hbm_to_vmem [thread:$0]  %s22, 256, %s24, [#allocation3], 128, 128, 8
    $region5: #{tpu_custom_call.1} parent=1 // pred_fallthru
      _
    // Predicated region
    $region6: #{tpu_custom_call.1} parent=1 // pred_check
      _
    $region7: #{tpu_custom_call.1} parent=1 // pred_check_branch
      %31 = sbr.rel (0) target = $region9
    $region8: #{tpu_custom_call.1} parent=1 // pred_region
      %33 = vsyncadd [#allocation6], 0
      %s34 = sshll.u32 %s1, 4
      %s35 = int_to_ptr.hbm [resolvable:$true] %s34
      %s36 = sshll.u32 [#allocation5], 4
      %s37 = int_to_ptr.vmem [resolvable:$true] %s36
      %42 = dma.hbm_to_vmem [thread:$0]  %s35, 32, %s37, [#allocation6], 16, 16, 1
    $region9: #{tpu_custom_call.1} parent=1 // pred_fallthru
      _
    // Predicated region
    $region10: #{tpu_custom_call.1} parent=1 // pred_check
      _
    $region11: #{tpu_custom_call.1} parent=1 // pred_check_branch
      %44 = sbr.rel (0) target = $region13
    $region12: #{tpu_custom_call.1} parent=1 // pred_region
      %46 = vsyncadd [#allocation6], 0
      %s48 = sshll.u32 %s2, 4
      %s49 = int_to_ptr.hbm [resolvable:$true] %s48
      %s50 = sshll.u32 [#allocation7], 4
      %s51 = int_to_ptr.vmem [resolvable:$true] %s50
      %53 = dma.hbm_to_vmem [thread:$0]  %s49, 64, %s51, [#allocation6]
    $region13: #{tpu_custom_call.1} parent=1 // pred_fallthru
      _
    // Predicated region
    $region14: #{tpu_custom_call.1} parent=1 // pred_check
      _
    $region15: #{tpu_custom_call.1} parent=1 // pred_check_branch
      %55 = sbr.rel (0) target = $region17
    $region16: #{tpu_custom_call.1} parent=1 // pred_region
      %57 = vsyncadd [#allocation9], 0
      %s59 = sshll.u32 %s3, 4
      %s60 = int_to_ptr.hbm [resolvable:$true] %s59
      %s61 = sshll.u32 [#allocation8], 4
      %s62 = int_to_ptr.vmem [resolvable:$true] %s61
      %64 = dma.hbm_to_vmem [thread:$0]  %s60, 64, %s62, [#allocation9]
    $region17: #{tpu_custom_call.1} parent=1 // pred_fallthru
      _
    // Predicated region
    $region18: #{tpu_custom_call.1} parent=1 // pred_check
      _
    $region19: #{tpu_custom_call.1} parent=1 // pred_check_branch
      %66 = sbr.rel (0) target = $region21
    $region20: #{tpu_custom_call.1} parent=1 // pred_region
      %68 = dma.done [#allocation3], 256
    $region21: #{tpu_custom_call.1} parent=1 // pred_fallthru
      _
    // Predicated region
    $region22: #{tpu_custom_call.1} parent=1 // pred_check
      _
    $region23: #{tpu_custom_call.1} parent=1 // pred_check_branch
      %70 = sbr.rel (0) target = $region25
    $region24: #{tpu_custom_call.1} parent=1 // pred_region
      %72 = dma.done [#allocation6], 32
    $region25: #{tpu_custom_call.1} parent=1 // pred_fallthru
      _
    // Predicated region
    $region26: #{tpu_custom_call.1} parent=1 // pred_check
      _
    $region27: #{tpu_custom_call.1} parent=1 // pred_check_branch
      %74 = sbr.rel (0) target = $region29
    $region28: #{tpu_custom_call.1} parent=1 // pred_region
      %76 = dma.done [#allocation6], 64
    $region29: #{tpu_custom_call.1} parent=1 // pred_fallthru
      _
    // Predicated region
    $region30: #{tpu_custom_call.1} parent=1 // pred_check
      _
    $region31: #{tpu_custom_call.1} parent=1 // pred_check_branch
      %78 = sbr.rel (0) target = $region33
    $region32: #{tpu_custom_call.1} parent=1 // pred_region
      %80 = dma.done [#allocation9], 64
    $region33: #{tpu_custom_call.1} parent=1 // pred_fallthru
      _
    %v81 = vld [vmem:[#allocation2] sm:$0xff]
    %v82 = vld [vmem:[#allocation2 + $0x8] sm:$0xff]
    %v83 = vld [vmem:[#allocation5] sm:$0x1]
    %v84 = vld [vmem:[#allocation5 + $0x1] sm:$0x1]
    %v85 = vld [vmem:[#allocation7] sm:$0xf]
    %v86 = vld [vmem:[#allocation8] sm:$0xf]
    %v87 = vmax.f32 %v86, 0.0
    %v88 = vand.u32 2147483647, %v86
    %v89 = vsub.f32 0.0, %v88
    %v90 = vmul.f32 %v89, 1.442695
    %v91 = vpow.pop %v90
    %v92 = vadd.f32 %v91, 1.0
    %v93 = vlog2.pop %v92
    %v94 = vmul.f32 %v93, 0.6931472
    %v95 = vmul.f32 -0.5, %v91
    %v96 = vadd.f32 %v95, 1.0
    %v97 = vmul.f32 %v96, %v91
    %v98 = vand.u32 2147483647, %v91
    %vm99 = vcmp.lt.f32.partialorder %v98, 0.0004427343
    %v100 = vsel %vm99, %v97, %v94
    %v101 = vadd.f32 %v87, %v100
    %vm102 = vcmask 257024
    %103 = vst.msk [vmem:[#allocation10] sm:$0xf] %vm102, %v101
    %v104 = vmul.f32 %v81, %v81
    %v105 = vmul.f32 %v82, %v82
    %v106 = vmul.f32 %v85, %v85
    %v107 = vadd.f32 %v101, %v106
    %v108 = vrcp.pop %v101
    %v109 = vmul.f32 %v101, %v108
    %v110 = vsub.f32 1.0, %v109
    %v111 = vmul.f32 %v108, %v110
    %v112 = vadd.f32 %v108, %v111
    %vm113 = vweird.f32 %v101
    %vm114 = vweird.f32 %v108
    %vm115 = vmor %vm113, %vm114
    %v116 = vsel %vm115, %v108, %v112
    %v117 = vand.u32 2147483647, %v101
    %vm118 = vcmp.eq.f32.partialorder %v117, 8.507059e+37
    %v119 = vand.u32 %v101, 2147483648
    %v120 = vor.u32 1.1754944e-38, %v119
    %v121 = vsel %vm118, %v120, %v116
    %v122 = vmul.f32 %v85, %v121
    %vm123 = vcmask 261120
    %v125 = vsel %vm123, %v121, 0
    %v128 = vsel %vm123, %v104, 0
    %130 = vmatpush.xpose.msra.mxu0 0.0
    %131 = vmatpush.xpose.msra.mxu0 0.0
    %132 = vmatpush.xpose.msra.mxu0 0.0
    %133 = vmatpush.xpose.msra.mxu0 0.0
    %134 = vmatpush.xpose.msra.mxu0 0.0
    %135 = vmatpush.xpose.msra.mxu0 0.0
    %136 = vmatpush.xpose.msra.mxu0 0.0
    %137 = vmatpush.xpose.msra.mxu0 0.0
    %138 = vmatpush.xpose.msra.mxu0 0.0
    %139 = vmatpush.xpose.msra.mxu0 0.0
    %140 = vmatpush.xpose.msra.mxu0 0.0
    %141 = vmatpush.xpose.msra.mxu0 0.0
    %142 = vmatpush.xpose.msra.mxu0 0.0
    %143 = vmatpush.xpose.msra.mxu0 0.0
    %144 = vmatpush.xpose.msra.mxu0 0.0
    %145 = vmatpush.xpose.msra.mxu0 %v128
    %146 = vmatmul.f32.gmra.mxu0 %v125
    %v147 = vpop.f32.mrf.mxu0
    %v148 = vadd.f32 0.0, %v147
    %149 = vdwg.mxu0
    %v151 = vsel %vm123, %v105, 0
    %153 = vmatpush.xpose.msra.mxu0 0.0
    %154 = vmatpush.xpose.msra.mxu0 0.0
    %155 = vmatpush.xpose.msra.mxu0 0.0
    %156 = vmatpush.xpose.msra.mxu0 0.0
    %157 = vmatpush.xpose.msra.mxu0 0.0
    %158 = vmatpush.xpose.msra.mxu0 0.0
    %159 = vmatpush.xpose.msra.mxu0 0.0
    %160 = vmatpush.xpose.msra.mxu0 0.0
    %161 = vmatpush.xpose.msra.mxu0 0.0
    %162 = vmatpush.xpose.msra.mxu0 0.0
    %163 = vmatpush.xpose.msra.mxu0 0.0
    %164 = vmatpush.xpose.msra.mxu0 0.0
    %165 = vmatpush.xpose.msra.mxu0 0.0
    %166 = vmatpush.xpose.msra.mxu0 0.0
    %167 = vmatpush.xpose.msra.mxu0 0.0
    %168 = vmatpush.xpose.msra.mxu0 %v151
    %169 = vmatmul.f32.gmra.mxu0 %v125
    %v170 = vpop.f32.mrf.mxu0
    %v171 = vadd.f32 0.0, %v170
    %172 = vdwg.mxu0
    %v174 = vsel %vm123, %v122, 0
    %v177 = vsel %vm123, %v81, 0
    %179 = vmatpush.xpose.msra.mxu0 0.0
    %180 = vmatpush.xpose.msra.mxu0 0.0
    %181 = vmatpush.xpose.msra.mxu0 0.0
    %182 = vmatpush.xpose.msra.mxu0 0.0
    %183 = vmatpush.xpose.msra.mxu0 0.0
    %184 = vmatpush.xpose.msra.mxu0 0.0
    %185 = vmatpush.xpose.msra.mxu0 0.0
    %186 = vmatpush.xpose.msra.mxu0 0.0
    %187 = vmatpush.xpose.msra.mxu0 0.0
    %188 = vmatpush.xpose.msra.mxu0 0.0
    %189 = vmatpush.xpose.msra.mxu0 0.0
    %190 = vmatpush.xpose.msra.mxu0 0.0
    %191 = vmatpush.xpose.msra.mxu0 0.0
    %192 = vmatpush.xpose.msra.mxu0 0.0
    %193 = vmatpush.xpose.msra.mxu0 0.0
    %194 = vmatpush.xpose.msra.mxu0 %v177
    %195 = vmatmul.f32.gmra.mxu0 %v174
    %v196 = vpop.f32.mrf.mxu0
    %v197 = vadd.f32 0.0, %v196
    %198 = vdwg.mxu0
    %v200 = vsel %vm123, %v82, 0
    %202 = vmatpush.xpose.msra.mxu0 0.0
    %203 = vmatpush.xpose.msra.mxu0 0.0
    %204 = vmatpush.xpose.msra.mxu0 0.0
    %205 = vmatpush.xpose.msra.mxu0 0.0
    %206 = vmatpush.xpose.msra.mxu0 0.0
    %207 = vmatpush.xpose.msra.mxu0 0.0
    %208 = vmatpush.xpose.msra.mxu0 0.0
    %209 = vmatpush.xpose.msra.mxu0 0.0
    %210 = vmatpush.xpose.msra.mxu0 0.0
    %211 = vmatpush.xpose.msra.mxu0 0.0
    %212 = vmatpush.xpose.msra.mxu0 0.0
    %213 = vmatpush.xpose.msra.mxu0 0.0
    %214 = vmatpush.xpose.msra.mxu0 0.0
    %215 = vmatpush.xpose.msra.mxu0 0.0
    %216 = vmatpush.xpose.msra.mxu0 0.0
    %217 = vmatpush.xpose.msra.mxu0 %v200
    %218 = vmatmul.f32.gmra.mxu0 %v174
    %v219 = vpop.f32.mrf.mxu0
    %v220 = vadd.f32 0.0, %v219
    %221 = vdwg.mxu0
    %v222 = vlog2.pop %v101
    %v223 = vmul.f32 %v222, 0.6931472
    %v224 = vsel %vm102, %v223, 0.0
    %225 = vadd.xlane.f32.xlu0 %v224
    %v226 = vpop.xlane.xlu0 %225
    %v227 = vmul.f32 %v85, %v122
    %v228 = vsel %vm102, %v227, 0.0
    %229 = vadd.xlane.f32.xlu0 %v228
    %v230 = vpop.xlane.xlu0 %229
    %v231 = vadd.f32 %v226, %v230
    %v232 = vadd.f32 %v231, %v148
    %v233 = vadd.f32 %v231, %v171
    %v234 = vmul.f32 %v232, 0.5
    %v235 = vmul.f32 %v233, 0.5
    %v236 = vsub.f32 -29.406033, %v234
    %v237 = vsub.f32 -29.406033, %v235
    %v238 = vadd.f32 %v236, %v197
    %v239 = vadd.f32 %v237, %v220
    %v240 = vadd.f32 %v238, -1.3862944
    %v241 = vadd.f32 %v239, -1.3862944
    %vm242 = vcmask 60416
    %v243 = vsel %vm242, %v240, -inf
    %v244 = vrot.slane %v243, 4
    %v245 = vmax.f32 %v243, %v244
    %v246 = vrot.slane %v245, 2
    %v247 = vmax.f32 %v245, %v246
    %v248 = vrot.slane %v247, 1
    %v249 = vmax.f32 %v247, %v248
    %v250 = vsel %vm242, %v241, -inf
    %v251 = vrot.slane %v250, 4
    %v252 = vmax.f32 %v250, %v251
    %v253 = vrot.slane %v252, 2
    %v254 = vmax.f32 %v252, %v253
    %v255 = vrot.slane %v254, 1
    %v256 = vmax.f32 %v254, %v255
    %v257 = vsub.f32 %v240, %v249
    %v258 = vsub.f32 %v241, %v256
    %v259 = vmul.f32 %v257, 1.442695
    %v260 = vpow.pop %v259
    %v261 = vmul.f32 %v258, 1.442695
    %v262 = vpow.pop %v261
    %v263 = vsel %vm242, %v260, 0.0
    %v264 = vrot.slane %v263, 4
    %v265 = vadd.f32 %v263, %v264
    %v266 = vrot.slane %v265, 2
    %v267 = vadd.f32 %v265, %v266
    %v268 = vrot.slane %v267, 1
    %v269 = vadd.f32 %v267, %v268
    %v270 = vsel %vm242, %v262, 0.0
    %v271 = vrot.slane %v270, 4
    %v272 = vadd.f32 %v270, %v271
    %v273 = vrot.slane %v272, 2
    %v274 = vadd.f32 %v272, %v273
    %v275 = vrot.slane %v274, 1
    %v276 = vadd.f32 %v274, %v275
    %v277 = vlog2.pop %v269
    %v278 = vmul.f32 %v277, 0.6931472
    %v279 = vlog2.pop %v276
    %v280 = vmul.f32 %v279, 0.6931472
    %v281 = vadd.f32 %v249, %v278
    %v282 = vadd.f32 %v256, %v280
    %v283 = vsub.f32 %v240, %v281
    %v284 = vsub.f32 %v241, %v282
    %v285 = vmul.f32 %v283, 1.442695
    %v286 = vpow.pop %v285
    %v287 = vmul.f32 %v284, 1.442695
    %v288 = vpow.pop %v287
    %v291 = vperm.slane %v83, 0
    %v292 = vperm.slane %v84, 0
    %v295 = vmul.f32 %v286, %v291
    %v296 = vmul.f32 %v288, %v292
    %v297 = vsel %vm242, %v295, 0.0
    %298 = vadd.xlane.f32.xlu0 %v297
    %v299 = vpop.xlane.xlu0 %298
    %v300 = vsel %vm242, %v296, 0.0
    %301 = vadd.xlane.f32.xlu0 %v300
    %v302 = vpop.xlane.xlu0 %301
    %v303 = vadd.f32 %v299, 1.0
    %v304 = vadd.f32 %v302, 1.0
    %v305 = vrcp.pop %v303
    %v306 = vmul.f32 %v303, %v305
    %v307 = vsub.f32 1.0, %v306
    %v308 = vmul.f32 %v305, %v307
    %v309 = vadd.f32 %v305, %v308
    %vm310 = vweird.f32 %v303
    %vm311 = vweird.f32 %v305
    %vm312 = vmor %vm310, %vm311
    %v313 = vsel %vm312, %v305, %v309
    %v314 = vand.u32 2147483647, %v303
    %vm315 = vcmp.eq.f32.partialorder %v314, 8.507059e+37
    %v316 = vand.u32 %v303, 2147483648
    %v317 = vor.u32 1.1754944e-38, %v316
    %v318 = vsel %vm315, %v317, %v313
    %v319 = vrcp.pop %v304
    %v320 = vmul.f32 %v304, %v319
    %v321 = vsub.f32 1.0, %v320
    %v322 = vmul.f32 %v319, %v321
    %v323 = vadd.f32 %v319, %v322
    %vm324 = vweird.f32 %v304
    %vm325 = vweird.f32 %v319
    %vm326 = vmor %vm324, %vm325
    %v327 = vsel %vm326, %v319, %v323
    %v328 = vand.u32 2147483647, %v304
    %vm329 = vcmp.eq.f32.partialorder %v328, 8.507059e+37
    %v330 = vand.u32 %v304, 2147483648
    %v331 = vor.u32 1.1754944e-38, %v330
    %v332 = vsel %vm329, %v331, %v327
    %vm333 = vcmask 1043456
    %v334 = vsel %vm333, %v303, 0.0
    %v335 = vrot.slane %v334, 4
    %v336 = vadd.f32 %v334, %v335
    %v337 = vrot.slane %v336, 2
    %v338 = vadd.f32 %v336, %v337
    %v339 = vrot.slane %v338, 1
    %v340 = vadd.f32 %v338, %v339
    %v341 = vsel %vm333, %v304, 0.0
    %v342 = vrot.slane %v341, 4
    %v343 = vadd.f32 %v341, %v342
    %v344 = vrot.slane %v343, 2
    %v345 = vadd.f32 %v343, %v344
    %v346 = vrot.slane %v345, 1
    %v347 = vadd.f32 %v345, %v346
    %v348 = vrcp.pop %v340
    %v349 = vmul.f32 %v340, %v348
    %v350 = vsub.f32 1.0, %v349
    %v351 = vmul.f32 %v348, %v350
    %v352 = vadd.f32 %v348, %v351
    %vm353 = vweird.f32 %v340
    %vm354 = vweird.f32 %v348
    %vm355 = vmor %vm353, %vm354
    %v356 = vsel %vm355, %v348, %v352
    %v357 = vand.u32 2147483647, %v340
    %vm358 = vcmp.eq.f32.partialorder %v357, 8.507059e+37
    %v359 = vand.u32 %v340, 2147483648
    %v360 = vor.u32 1.1754944e-38, %v359
    %v361 = vsel %vm358, %v360, %v356
    %v362 = vrcp.pop %v347
    %v363 = vmul.f32 %v347, %v362
    %v364 = vsub.f32 1.0, %v363
    %v365 = vmul.f32 %v362, %v364
    %v366 = vadd.f32 %v362, %v365
    %vm367 = vweird.f32 %v347
    %vm368 = vweird.f32 %v362
    %vm369 = vmor %vm367, %vm368
    %v370 = vsel %vm369, %v362, %v366
    %v371 = vand.u32 2147483647, %v347
    %vm372 = vcmp.eq.f32.partialorder %v371, 8.507059e+37
    %v373 = vand.u32 %v347, 2147483648
    %v374 = vor.u32 1.1754944e-38, %v373
    %v375 = vsel %vm372, %v374, %v370
    %v376 = vmul.f32 %v303, %v361
    %v377 = vmul.f32 %v304, %v375
    %vm378 = vcmask 64512
    %v380 = vsel %vm378, %v295, 0
    %382 = vmatpush.msra.mxu0 0.0
    %383 = vmatpush.msra.mxu0 0.0
    %384 = vmatpush.msra.mxu0 0.0
    %385 = vmatpush.msra.mxu0 0.0
    %386 = vmatpush.msra.mxu0 0.0
    %387 = vmatpush.msra.mxu0 0.0
    %388 = vmatpush.msra.mxu0 0.0
    %389 = vmatpush.msra.mxu0 0.0
    %390 = vmatpush.msra.mxu0 0.0
    %391 = vmatpush.msra.mxu0 0.0
    %392 = vmatpush.msra.mxu0 0.0
    %393 = vmatpush.msra.mxu0 0.0
    %394 = vmatpush.msra.mxu0 0.0
    %395 = vmatpush.msra.mxu0 0.0
    %396 = vmatpush.msra.mxu0 0.0
    %397 = vmatpush.msra.mxu0 %v81
    %398 = vmatmul.f32.gmra.mxu0 %v380
    %v399 = vpop.f32.mrf.mxu0
    %v400 = vadd.f32 %v85, %v399
    %401 = vdwg.mxu0
    %v403 = vsel %vm378, %v296, 0
    %405 = vmatpush.msra.mxu0 0.0
    %406 = vmatpush.msra.mxu0 0.0
    %407 = vmatpush.msra.mxu0 0.0
    %408 = vmatpush.msra.mxu0 0.0
    %409 = vmatpush.msra.mxu0 0.0
    %410 = vmatpush.msra.mxu0 0.0
    %411 = vmatpush.msra.mxu0 0.0
    %412 = vmatpush.msra.mxu0 0.0
    %413 = vmatpush.msra.mxu0 0.0
    %414 = vmatpush.msra.mxu0 0.0
    %415 = vmatpush.msra.mxu0 0.0
    %416 = vmatpush.msra.mxu0 0.0
    %417 = vmatpush.msra.mxu0 0.0
    %418 = vmatpush.msra.mxu0 0.0
    %419 = vmatpush.msra.mxu0 0.0
    %420 = vmatpush.msra.mxu0 %v82
    %421 = vmatmul.f32.gmra.mxu0 %v403
    %v422 = vpop.f32.mrf.mxu0
    %v423 = vadd.f32 %v85, %v422
    %424 = vdwg.mxu0
    %v425 = vmul.f32 %v400, %v318
    %v426 = vmul.f32 %v423, %v332
    %427 = vmatpush.msra.mxu0 0.0
    %428 = vmatpush.msra.mxu0 0.0
    %429 = vmatpush.msra.mxu0 0.0
    %430 = vmatpush.msra.mxu0 0.0
    %431 = vmatpush.msra.mxu0 0.0
    %432 = vmatpush.msra.mxu0 0.0
    %433 = vmatpush.msra.mxu0 0.0
    %434 = vmatpush.msra.mxu0 0.0
    %435 = vmatpush.msra.mxu0 0.0
    %436 = vmatpush.msra.mxu0 0.0
    %437 = vmatpush.msra.mxu0 0.0
    %438 = vmatpush.msra.mxu0 0.0
    %439 = vmatpush.msra.mxu0 0.0
    %440 = vmatpush.msra.mxu0 0.0
    %441 = vmatpush.msra.mxu0 0.0
    %442 = vmatpush.msra.mxu0 %v104
    %443 = vmatmul.f32.gmra.mxu0 %v380
    %v444 = vpop.f32.mrf.mxu0
    %v445 = vadd.f32 %v107, %v444
    %446 = vdwg.mxu0
    %447 = vmatpush.msra.mxu0 0.0
    %448 = vmatpush.msra.mxu0 0.0
    %449 = vmatpush.msra.mxu0 0.0
    %450 = vmatpush.msra.mxu0 0.0
    %451 = vmatpush.msra.mxu0 0.0
    %452 = vmatpush.msra.mxu0 0.0
    %453 = vmatpush.msra.mxu0 0.0
    %454 = vmatpush.msra.mxu0 0.0
    %455 = vmatpush.msra.mxu0 0.0
    %456 = vmatpush.msra.mxu0 0.0
    %457 = vmatpush.msra.mxu0 0.0
    %458 = vmatpush.msra.mxu0 0.0
    %459 = vmatpush.msra.mxu0 0.0
    %460 = vmatpush.msra.mxu0 0.0
    %461 = vmatpush.msra.mxu0 0.0
    %462 = vmatpush.msra.mxu0 %v105
    %463 = vmatmul.f32.gmra.mxu0 %v403
    %v464 = vpop.f32.mrf.mxu0
    %v465 = vadd.f32 %v107, %v464
    %466 = vdwg.mxu0
    %v467 = vmul.f32 %v445, %v318
    %v468 = vmul.f32 %v465, %v332
    %v469 = vmul.f32 %v425, %v425
    %v470 = vmul.f32 %v426, %v426
    %v471 = vsub.f32 %v467, %v469
    %v472 = vsub.f32 %v468, %v470
    %v473 = vlog2.pop %v376
    %v474 = vmul.f32 %v473, 0.6931472
    %v475 = vlog2.pop %v377
    %v476 = vmul.f32 %v475, 0.6931472
    %v477 = vrcp.pop %v471
    %v478 = vmul.f32 %v471, %v477
    %v479 = vsub.f32 1.0, %v478
    %v480 = vmul.f32 %v477, %v479
    %v481 = vadd.f32 %v477, %v480
    %vm482 = vweird.f32 %v471
    %vm483 = vweird.f32 %v477
    %vm484 = vmor %vm482, %vm483
    %v485 = vsel %vm484, %v477, %v481
    %v486 = vand.u32 2147483647, %v471
    %vm487 = vcmp.eq.f32.partialorder %v486, 8.507059e+37
    %v488 = vand.u32 %v471, 2147483648
    %v489 = vor.u32 1.1754944e-38, %v488
    %v490 = vsel %vm487, %v489, %v485
    %v491 = vrcp.pop %v472
    %v492 = vmul.f32 %v472, %v491
    %v493 = vsub.f32 1.0, %v492
    %v494 = vmul.f32 %v491, %v493
    %v495 = vadd.f32 %v491, %v494
    %vm496 = vweird.f32 %v472
    %vm497 = vweird.f32 %v491
    %vm498 = vmor %vm496, %vm497
    %v499 = vsel %vm498, %v491, %v495
    %v500 = vand.u32 2147483647, %v472
    %vm501 = vcmp.eq.f32.partialorder %v500, 8.507059e+37
    %v502 = vand.u32 %v472, 2147483648
    %v503 = vor.u32 1.1754944e-38, %v502
    %v504 = vsel %vm501, %v503, %v499
    %v505 = vmul.f32 %v425, %v490
    %v506 = vmul.f32 %v426, %v504
    %v508 = vsel %vm123, %v490, 0
    %510 = vmatpush.xpose.msra.mxu0 0.0
    %511 = vmatpush.xpose.msra.mxu0 0.0
    %512 = vmatpush.xpose.msra.mxu0 0.0
    %513 = vmatpush.xpose.msra.mxu0 0.0
    %514 = vmatpush.xpose.msra.mxu0 0.0
    %515 = vmatpush.xpose.msra.mxu0 0.0
    %516 = vmatpush.xpose.msra.mxu0 0.0
    %517 = vmatpush.xpose.msra.mxu0 0.0
    %518 = vmatpush.xpose.msra.mxu0 0.0
    %519 = vmatpush.xpose.msra.mxu0 0.0
    %520 = vmatpush.xpose.msra.mxu0 0.0
    %521 = vmatpush.xpose.msra.mxu0 0.0
    %522 = vmatpush.xpose.msra.mxu0 0.0
    %523 = vmatpush.xpose.msra.mxu0 0.0
    %524 = vmatpush.xpose.msra.mxu0 0.0
    %525 = vmatpush.xpose.msra.mxu0 %v128
    %526 = vmatmul.f32.gmra.mxu0 %v508
    %v527 = vpop.f32.mrf.mxu0
    %v528 = vadd.f32 0.0, %v527
    %529 = vdwg.mxu0
    %v531 = vsel %vm123, %v504, 0
    %533 = vmatpush.xpose.msra.mxu0 0.0
    %534 = vmatpush.xpose.msra.mxu0 0.0
    %535 = vmatpush.xpose.msra.mxu0 0.0
    %536 = vmatpush.xpose.msra.mxu0 0.0
    %537 = vmatpush.xpose.msra.mxu0 0.0
    %538 = vmatpush.xpose.msra.mxu0 0.0
    %539 = vmatpush.xpose.msra.mxu0 0.0
    %540 = vmatpush.xpose.msra.mxu0 0.0
    %541 = vmatpush.xpose.msra.mxu0 0.0
    %542 = vmatpush.xpose.msra.mxu0 0.0
    %543 = vmatpush.xpose.msra.mxu0 0.0
    %544 = vmatpush.xpose.msra.mxu0 0.0
    %545 = vmatpush.xpose.msra.mxu0 0.0
    %546 = vmatpush.xpose.msra.mxu0 0.0
    %547 = vmatpush.xpose.msra.mxu0 0.0
    %548 = vmatpush.xpose.msra.mxu0 %v151
    %549 = vmatmul.f32.gmra.mxu0 %v531
    %v550 = vpop.f32.mrf.mxu0
    %v551 = vadd.f32 0.0, %v550
    %552 = vdwg.mxu0
    %v554 = vsel %vm123, %v505, 0
    %556 = vmatpush.xpose.msra.mxu0 0.0
    %557 = vmatpush.xpose.msra.mxu0 0.0
    %558 = vmatpush.xpose.msra.mxu0 0.0
    %559 = vmatpush.xpose.msra.mxu0 0.0
    %560 = vmatpush.xpose.msra.mxu0 0.0
    %561 = vmatpush.xpose.msra.mxu0 0.0
    %562 = vmatpush.xpose.msra.mxu0 0.0
    %563 = vmatpush.xpose.msra.mxu0 0.0
    %564 = vmatpush.xpose.msra.mxu0 0.0
    %565 = vmatpush.xpose.msra.mxu0 0.0
    %566 = vmatpush.xpose.msra.mxu0 0.0
    %567 = vmatpush.xpose.msra.mxu0 0.0
    %568 = vmatpush.xpose.msra.mxu0 0.0
    %569 = vmatpush.xpose.msra.mxu0 0.0
    %570 = vmatpush.xpose.msra.mxu0 0.0
    %571 = vmatpush.xpose.msra.mxu0 %v177
    %572 = vmatmul.f32.gmra.mxu0 %v554
    %v573 = vpop.f32.mrf.mxu0
    %v574 = vadd.f32 0.0, %v573
    %575 = vdwg.mxu0
    %v577 = vsel %vm123, %v506, 0
    %579 = vmatpush.xpose.msra.mxu0 0.0
    %580 = vmatpush.xpose.msra.mxu0 0.0
    %581 = vmatpush.xpose.msra.mxu0 0.0
    %582 = vmatpush.xpose.msra.mxu0 0.0
    %583 = vmatpush.xpose.msra.mxu0 0.0
    %584 = vmatpush.xpose.msra.mxu0 0.0
    %585 = vmatpush.xpose.msra.mxu0 0.0
    %586 = vmatpush.xpose.msra.mxu0 0.0
    %587 = vmatpush.xpose.msra.mxu0 0.0
    %588 = vmatpush.xpose.msra.mxu0 0.0
    %589 = vmatpush.xpose.msra.mxu0 0.0
    %590 = vmatpush.xpose.msra.mxu0 0.0
    %591 = vmatpush.xpose.msra.mxu0 0.0
    %592 = vmatpush.xpose.msra.mxu0 0.0
    %593 = vmatpush.xpose.msra.mxu0 0.0
    %594 = vmatpush.xpose.msra.mxu0 %v200
    %595 = vmatmul.f32.gmra.mxu0 %v577
    %v596 = vpop.f32.mrf.mxu0
    %v597 = vadd.f32 0.0, %v596
    %598 = vdwg.mxu0
    %v599 = vlog2.pop %v471
    %v600 = vmul.f32 %v599, 0.6931472
    %v601 = vlog2.pop %v472
    %v602 = vmul.f32 %v601, 0.6931472
    %v603 = vsel %vm102, %v600, 0.0
    %604 = vadd.xlane.f32.xlu0 %v603
    %v605 = vpop.xlane.xlu0 %604
    %v606 = vsel %vm102, %v602, 0.0
    %607 = vadd.xlane.f32.xlu0 %v606
    %v608 = vpop.xlane.xlu0 %607
    %v609 = vmul.f32 %v425, %v505
    %v610 = vmul.f32 %v426, %v506
    %v611 = vsel %vm102, %v609, 0.0
    %612 = vadd.xlane.f32.xlu0 %v611
    %v613 = vpop.xlane.xlu0 %612
    %v614 = vsel %vm102, %v610, 0.0
    %615 = vadd.xlane.f32.xlu0 %v614
    %v616 = vpop.xlane.xlu0 %615
    %v617 = vadd.f32 %v605, %v613
    %v618 = vadd.f32 %v608, %v616
    %v619 = vadd.f32 %v617, %v528
    %v620 = vadd.f32 %v618, %v551
    %v621 = vmul.f32 %v619, 0.5
    %v622 = vmul.f32 %v620, 0.5
    %v623 = vsub.f32 -29.406033, %v621
    %v624 = vsub.f32 -29.406033, %v622
    %v625 = vadd.f32 %v623, %v574
    %v626 = vadd.f32 %v624, %v597
    %v627 = vadd.f32 %v625, %v474
    %v628 = vadd.f32 %v626, %v476
    %v629 = vsel %vm242, %v627, -inf
    %v630 = vrot.slane %v629, 4
    %v631 = vmax.f32 %v629, %v630
    %v632 = vrot.slane %v631, 2
    %v633 = vmax.f32 %v631, %v632
    %v634 = vrot.slane %v633, 1
    %v635 = vmax.f32 %v633, %v634
    %v636 = vsel %vm242, %v628, -inf
    %v637 = vrot.slane %v636, 4
    %v638 = vmax.f32 %v636, %v637
    %v639 = vrot.slane %v638, 2
    %v640 = vmax.f32 %v638, %v639
    %v641 = vrot.slane %v640, 1
    %v642 = vmax.f32 %v640, %v641
    %v643 = vsub.f32 %v627, %v635
    %v644 = vsub.f32 %v628, %v642
    %v645 = vmul.f32 %v643, 1.442695
    %v646 = vpow.pop %v645
    %v647 = vmul.f32 %v644, 1.442695
    %v648 = vpow.pop %v647
    %v649 = vsel %vm242, %v646, 0.0
    %v650 = vrot.slane %v649, 4
    %v651 = vadd.f32 %v649, %v650
    %v652 = vrot.slane %v651, 2
    %v653 = vadd.f32 %v651, %v652
    %v654 = vrot.slane %v653, 1
    %v655 = vadd.f32 %v653, %v654
    %v656 = vsel %vm242, %v648, 0.0
    %v657 = vrot.slane %v656, 4
    %v658 = vadd.f32 %v656, %v657
    %v659 = vrot.slane %v658, 2
    %v660 = vadd.f32 %v658, %v659
    %v661 = vrot.slane %v660, 1
    %v662 = vadd.f32 %v660, %v661
    %v663 = vlog2.pop %v655
    %v664 = vmul.f32 %v663, 0.6931472
    %v665 = vlog2.pop %v662
    %v666 = vmul.f32 %v665, 0.6931472
    %v667 = vadd.f32 %v635, %v664
    %v668 = vadd.f32 %v642, %v666
    %v669 = vsub.f32 %v627, %v667
    %v670 = vsub.f32 %v628, %v668
    %v671 = vmul.f32 %v669, 1.442695
    %v672 = vpow.pop %v671
    %v673 = vmul.f32 %v670, 1.442695
    %v674 = vpow.pop %v673
    %v675 = vmul.f32 %v672, %v291
    %v676 = vmul.f32 %v674, %v292
    %v677 = vsel %vm242, %v675, 0.0
    %678 = vadd.xlane.f32.xlu0 %v677
    %v679 = vpop.xlane.xlu0 %678
    %v680 = vsel %vm242, %v676, 0.0
    %681 = vadd.xlane.f32.xlu0 %v680
    %v682 = vpop.xlane.xlu0 %681
    %v683 = vadd.f32 %v679, 1.0
    %v684 = vadd.f32 %v682, 1.0
    %v685 = vrcp.pop %v683
    %v686 = vmul.f32 %v683, %v685
    %v687 = vsub.f32 1.0, %v686
    %v688 = vmul.f32 %v685, %v687
    %v689 = vadd.f32 %v685, %v688
    %vm690 = vweird.f32 %v683
    %vm691 = vweird.f32 %v685
    %vm692 = vmor %vm690, %vm691
    %v693 = vsel %vm692, %v685, %v689
    %v694 = vand.u32 2147483647, %v683
    %vm695 = vcmp.eq.f32.partialorder %v694, 8.507059e+37
    %v696 = vand.u32 %v683, 2147483648
    %v697 = vor.u32 1.1754944e-38, %v696
    %v698 = vsel %vm695, %v697, %v693
    %v699 = vrcp.pop %v684
    %v700 = vmul.f32 %v684, %v699
    %v701 = vsub.f32 1.0, %v700
    %v702 = vmul.f32 %v699, %v701
    %v703 = vadd.f32 %v699, %v702
    %vm704 = vweird.f32 %v684
    %vm705 = vweird.f32 %v699
    %vm706 = vmor %vm704, %vm705
    %v707 = vsel %vm706, %v699, %v703
    %v708 = vand.u32 2147483647, %v684
    %vm709 = vcmp.eq.f32.partialorder %v708, 8.507059e+37
    %v710 = vand.u32 %v684, 2147483648
    %v711 = vor.u32 1.1754944e-38, %v710
    %v712 = vsel %vm709, %v711, %v707
    %v713 = vsel %vm333, %v683, 0.0
    %v714 = vrot.slane %v713, 4
    %v715 = vadd.f32 %v713, %v714
    %v716 = vrot.slane %v715, 2
    %v717 = vadd.f32 %v715, %v716
    %v718 = vrot.slane %v717, 1
    %v719 = vadd.f32 %v717, %v718
    %v720 = vsel %vm333, %v684, 0.0
    %v721 = vrot.slane %v720, 4
    %v722 = vadd.f32 %v720, %v721
    %v723 = vrot.slane %v722, 2
    %v724 = vadd.f32 %v722, %v723
    %v725 = vrot.slane %v724, 1
    %v726 = vadd.f32 %v724, %v725
    %v727 = vrcp.pop %v719
    %v728 = vmul.f32 %v719, %v727
    %v729 = vsub.f32 1.0, %v728
    %v730 = vmul.f32 %v727, %v729
    %v731 = vadd.f32 %v727, %v730
    %vm732 = vweird.f32 %v719
    %vm733 = vweird.f32 %v727
    %vm734 = vmor %vm732, %vm733
    %v735 = vsel %vm734, %v727, %v731
    %v736 = vand.u32 2147483647, %v719
    %vm737 = vcmp.eq.f32.partialorder %v736, 8.507059e+37
    %v738 = vand.u32 %v719, 2147483648
    %v739 = vor.u32 1.1754944e-38, %v738
    %v740 = vsel %vm737, %v739, %v735
    %v741 = vrcp.pop %v726
    %v742 = vmul.f32 %v726, %v741
    %v743 = vsub.f32 1.0, %v742
    %v744 = vmul.f32 %v741, %v743
    %v745 = vadd.f32 %v741, %v744
    %vm746 = vweird.f32 %v726
    %vm747 = vweird.f32 %v741
    %vm748 = vmor %vm746, %vm747
    %v749 = vsel %vm748, %v741, %v745
    %v750 = vand.u32 2147483647, %v726
    %vm751 = vcmp.eq.f32.partialorder %v750, 8.507059e+37
    %v752 = vand.u32 %v726, 2147483648
    %v753 = vor.u32 1.1754944e-38, %v752
    %v754 = vsel %vm751, %v753, %v749
    %v755 = vmul.f32 %v683, %v740
    %v756 = vmul.f32 %v684, %v754
    %v758 = vsel %vm378, %v675, 0
    %760 = vmatpush.msra.mxu0 0.0
    %761 = vmatpush.msra.mxu0 0.0
    %762 = vmatpush.msra.mxu0 0.0
    %763 = vmatpush.msra.mxu0 0.0
    %764 = vmatpush.msra.mxu0 0.0
    %765 = vmatpush.msra.mxu0 0.0
    %766 = vmatpush.msra.mxu0 0.0
    %767 = vmatpush.msra.mxu0 0.0
    %768 = vmatpush.msra.mxu0 0.0
    %769 = vmatpush.msra.mxu0 0.0
    %770 = vmatpush.msra.mxu0 0.0
    %771 = vmatpush.msra.mxu0 0.0
    %772 = vmatpush.msra.mxu0 0.0
    %773 = vmatpush.msra.mxu0 0.0
    %774 = vmatpush.msra.mxu0 0.0
    %775 = vmatpush.msra.mxu0 %v81
    %776 = vmatmul.f32.gmra.mxu0 %v758
    %v777 = vpop.f32.mrf.mxu0
    %v778 = vadd.f32 %v85, %v777
    %779 = vdwg.mxu0
    %v781 = vsel %vm378, %v676, 0
    %783 = vmatpush.msra.mxu0 0.0
    %784 = vmatpush.msra.mxu0 0.0
    %785 = vmatpush.msra.mxu0 0.0
    %786 = vmatpush.msra.mxu0 0.0
    %787 = vmatpush.msra.mxu0 0.0
    %788 = vmatpush.msra.mxu0 0.0
    %789 = vmatpush.msra.mxu0 0.0
    %790 = vmatpush.msra.mxu0 0.0
    %791 = vmatpush.msra.mxu0 0.0
    %792 = vmatpush.msra.mxu0 0.0
    %793 = vmatpush.msra.mxu0 0.0
    %794 = vmatpush.msra.mxu0 0.0
    %795 = vmatpush.msra.mxu0 0.0
    %796 = vmatpush.msra.mxu0 0.0
    %797 = vmatpush.msra.mxu0 0.0
    %798 = vmatpush.msra.mxu0 %v82
    %799 = vmatmul.f32.gmra.mxu0 %v781
    %v800 = vpop.f32.mrf.mxu0
    %v801 = vadd.f32 %v85, %v800
    %802 = vdwg.mxu0
    %v803 = vmul.f32 %v778, %v698
    %v804 = vmul.f32 %v801, %v712
    %805 = vmatpush.msra.mxu0 0.0
    %806 = vmatpush.msra.mxu0 0.0
    %807 = vmatpush.msra.mxu0 0.0
    %808 = vmatpush.msra.mxu0 0.0
    %809 = vmatpush.msra.mxu0 0.0
    %810 = vmatpush.msra.mxu0 0.0
    %811 = vmatpush.msra.mxu0 0.0
    %812 = vmatpush.msra.mxu0 0.0
    %813 = vmatpush.msra.mxu0 0.0
    %814 = vmatpush.msra.mxu0 0.0
    %815 = vmatpush.msra.mxu0 0.0
    %816 = vmatpush.msra.mxu0 0.0
    %817 = vmatpush.msra.mxu0 0.0
    %818 = vmatpush.msra.mxu0 0.0
    %819 = vmatpush.msra.mxu0 0.0
    %820 = vmatpush.msra.mxu0 %v104
    %821 = vmatmul.f32.gmra.mxu0 %v758
    %v822 = vpop.f32.mrf.mxu0
    %v823 = vadd.f32 %v107, %v822
    %824 = vdwg.mxu0
    %825 = vmatpush.msra.mxu0 0.0
    %826 = vmatpush.msra.mxu0 0.0
    %827 = vmatpush.msra.mxu0 0.0
    %828 = vmatpush.msra.mxu0 0.0
    %829 = vmatpush.msra.mxu0 0.0
    %830 = vmatpush.msra.mxu0 0.0
    %831 = vmatpush.msra.mxu0 0.0
    %832 = vmatpush.msra.mxu0 0.0
    %833 = vmatpush.msra.mxu0 0.0
    %834 = vmatpush.msra.mxu0 0.0
    %835 = vmatpush.msra.mxu0 0.0
    %836 = vmatpush.msra.mxu0 0.0
    %837 = vmatpush.msra.mxu0 0.0
    %838 = vmatpush.msra.mxu0 0.0
    %839 = vmatpush.msra.mxu0 0.0
    %840 = vmatpush.msra.mxu0 %v105
    %841 = vmatmul.f32.gmra.mxu0 %v781
    %v842 = vpop.f32.mrf.mxu0
    %v843 = vadd.f32 %v107, %v842
    %844 = vdwg.mxu0
    %v845 = vmul.f32 %v823, %v698
    %v846 = vmul.f32 %v843, %v712
    %v847 = vmul.f32 %v803, %v803
    %v848 = vmul.f32 %v804, %v804
    %v849 = vsub.f32 %v845, %v847
    %v850 = vsub.f32 %v846, %v848
    %v851 = vlog2.pop %v755
    %v852 = vmul.f32 %v851, 0.6931472
    %v853 = vlog2.pop %v756
    %v854 = vmul.f32 %v853, 0.6931472
    %v855 = vrcp.pop %v849
    %v856 = vmul.f32 %v849, %v855
    %v857 = vsub.f32 1.0, %v856
    %v858 = vmul.f32 %v855, %v857
    %v859 = vadd.f32 %v855, %v858
    %vm860 = vweird.f32 %v849
    %vm861 = vweird.f32 %v855
    %vm862 = vmor %vm860, %vm861
    %v863 = vsel %vm862, %v855, %v859
    %v864 = vand.u32 2147483647, %v849
    %vm865 = vcmp.eq.f32.partialorder %v864, 8.507059e+37
    %v866 = vand.u32 %v849, 2147483648
    %v867 = vor.u32 1.1754944e-38, %v866
    %v868 = vsel %vm865, %v867, %v863
    %v869 = vrcp.pop %v850
    %v870 = vmul.f32 %v850, %v869
    %v871 = vsub.f32 1.0, %v870
    %v872 = vmul.f32 %v869, %v871
    %v873 = vadd.f32 %v869, %v872
    %vm874 = vweird.f32 %v850
    %vm875 = vweird.f32 %v869
    %vm876 = vmor %vm874, %vm875
    %v877 = vsel %vm876, %v869, %v873
    %v878 = vand.u32 2147483647, %v850
    %vm879 = vcmp.eq.f32.partialorder %v878, 8.507059e+37
    %v880 = vand.u32 %v850, 2147483648
    %v881 = vor.u32 1.1754944e-38, %v880
    %v882 = vsel %vm879, %v881, %v877
    %v883 = vmul.f32 %v803, %v868
    %v884 = vmul.f32 %v804, %v882
    %v886 = vsel %vm123, %v868, 0
    %888 = vmatpush.xpose.msra.mxu0 0.0
    %889 = vmatpush.xpose.msra.mxu0 0.0
    %890 = vmatpush.xpose.msra.mxu0 0.0
    %891 = vmatpush.xpose.msra.mxu0 0.0
    %892 = vmatpush.xpose.msra.mxu0 0.0
    %893 = vmatpush.xpose.msra.mxu0 0.0
    %894 = vmatpush.xpose.msra.mxu0 0.0
    %895 = vmatpush.xpose.msra.mxu0 0.0
    %896 = vmatpush.xpose.msra.mxu0 0.0
    %897 = vmatpush.xpose.msra.mxu0 0.0
    %898 = vmatpush.xpose.msra.mxu0 0.0
    %899 = vmatpush.xpose.msra.mxu0 0.0
    %900 = vmatpush.xpose.msra.mxu0 0.0
    %901 = vmatpush.xpose.msra.mxu0 0.0
    %902 = vmatpush.xpose.msra.mxu0 0.0
    %903 = vmatpush.xpose.msra.mxu0 %v128
    %904 = vmatmul.f32.gmra.mxu0 %v886
    %v905 = vpop.f32.mrf.mxu0
    %v906 = vadd.f32 0.0, %v905
    %907 = vdwg.mxu0
    %v909 = vsel %vm123, %v882, 0
    %911 = vmatpush.xpose.msra.mxu0 0.0
    %912 = vmatpush.xpose.msra.mxu0 0.0
    %913 = vmatpush.xpose.msra.mxu0 0.0
    %914 = vmatpush.xpose.msra.mxu0 0.0
    %915 = vmatpush.xpose.msra.mxu0 0.0
    %916 = vmatpush.xpose.msra.mxu0 0.0
    %917 = vmatpush.xpose.msra.mxu0 0.0
    %918 = vmatpush.xpose.msra.mxu0 0.0
    %919 = vmatpush.xpose.msra.mxu0 0.0
    %920 = vmatpush.xpose.msra.mxu0 0.0
    %921 = vmatpush.xpose.msra.mxu0 0.0
    %922 = vmatpush.xpose.msra.mxu0 0.0
    %923 = vmatpush.xpose.msra.mxu0 0.0
    %924 = vmatpush.xpose.msra.mxu0 0.0
    %925 = vmatpush.xpose.msra.mxu0 0.0
    %926 = vmatpush.xpose.msra.mxu0 %v151
    %927 = vmatmul.f32.gmra.mxu0 %v909
    %v928 = vpop.f32.mrf.mxu0
    %v929 = vadd.f32 0.0, %v928
    %930 = vdwg.mxu0
    %v932 = vsel %vm123, %v883, 0
    %934 = vmatpush.xpose.msra.mxu0 0.0
    %935 = vmatpush.xpose.msra.mxu0 0.0
    %936 = vmatpush.xpose.msra.mxu0 0.0
    %937 = vmatpush.xpose.msra.mxu0 0.0
    %938 = vmatpush.xpose.msra.mxu0 0.0
    %939 = vmatpush.xpose.msra.mxu0 0.0
    %940 = vmatpush.xpose.msra.mxu0 0.0
    %941 = vmatpush.xpose.msra.mxu0 0.0
    %942 = vmatpush.xpose.msra.mxu0 0.0
    %943 = vmatpush.xpose.msra.mxu0 0.0
    %944 = vmatpush.xpose.msra.mxu0 0.0
    %945 = vmatpush.xpose.msra.mxu0 0.0
    %946 = vmatpush.xpose.msra.mxu0 0.0
    %947 = vmatpush.xpose.msra.mxu0 0.0
    %948 = vmatpush.xpose.msra.mxu0 0.0
    %949 = vmatpush.xpose.msra.mxu0 %v177
    %950 = vmatmul.f32.gmra.mxu0 %v932
    %v951 = vpop.f32.mrf.mxu0
    %v952 = vadd.f32 0.0, %v951
    %953 = vdwg.mxu0
    %v955 = vsel %vm123, %v884, 0
    %957 = vmatpush.xpose.msra.mxu0 0.0
    %958 = vmatpush.xpose.msra.mxu0 0.0
    %959 = vmatpush.xpose.msra.mxu0 0.0
    %960 = vmatpush.xpose.msra.mxu0 0.0
    %961 = vmatpush.xpose.msra.mxu0 0.0
    %962 = vmatpush.xpose.msra.mxu0 0.0
    %963 = vmatpush.xpose.msra.mxu0 0.0
    %964 = vmatpush.xpose.msra.mxu0 0.0
    %965 = vmatpush.xpose.msra.mxu0 0.0
    %966 = vmatpush.xpose.msra.mxu0 0.0
    %967 = vmatpush.xpose.msra.mxu0 0.0
    %968 = vmatpush.xpose.msra.mxu0 0.0
    %969 = vmatpush.xpose.msra.mxu0 0.0
    %970 = vmatpush.xpose.msra.mxu0 0.0
    %971 = vmatpush.xpose.msra.mxu0 0.0
    %972 = vmatpush.xpose.msra.mxu0 %v200
    %973 = vmatmul.f32.gmra.mxu0 %v955
    %v974 = vpop.f32.mrf.mxu0
    %v975 = vadd.f32 0.0, %v974
    %976 = vdwg.mxu0
    %v977 = vlog2.pop %v849
    %v978 = vmul.f32 %v977, 0.6931472
    %v979 = vlog2.pop %v850
    %v980 = vmul.f32 %v979, 0.6931472
    %v981 = vsel %vm102, %v978, 0.0
    %982 = vadd.xlane.f32.xlu0 %v981
    %v983 = vpop.xlane.xlu0 %982
    %v984 = vsel %vm102, %v980, 0.0
    %985 = vadd.xlane.f32.xlu0 %v984
    %v986 = vpop.xlane.xlu0 %985
    %v987 = vmul.f32 %v803, %v883
    %v988 = vmul.f32 %v804, %v884
    %v989 = vsel %vm102, %v987, 0.0
    %990 = vadd.xlane.f32.xlu0 %v989
    %v991 = vpop.xlane.xlu0 %990
    %v992 = vsel %vm102, %v988, 0.0
    %993 = vadd.xlane.f32.xlu0 %v992
    %v994 = vpop.xlane.xlu0 %993
    %v995 = vadd.f32 %v983, %v991
    %v996 = vadd.f32 %v986, %v994
    %v997 = vadd.f32 %v995, %v906
    %v998 = vadd.f32 %v996, %v929
    %v999 = vmul.f32 %v997, 0.5
    %v1000 = vmul.f32 %v998, 0.5
    %v1001 = vsub.f32 -29.406033, %v999
    %v1002 = vsub.f32 -29.406033, %v1000
    %v1003 = vadd.f32 %v1001, %v952
    %v1004 = vadd.f32 %v1002, %v975
    %v1005 = vadd.f32 %v1003, %v852
    %v1006 = vadd.f32 %v1004, %v854
    %v1007 = vsel %vm242, %v1005, -inf
    %v1008 = vrot.slane %v1007, 4
    %v1009 = vmax.f32 %v1007, %v1008
    %v1010 = vrot.slane %v1009, 2
    %v1011 = vmax.f32 %v1009, %v1010
    %v1012 = vrot.slane %v1011, 1
    %v1013 = vmax.f32 %v1011, %v1012
    %v1014 = vsel %vm242, %v1006, -inf
    %v1015 = vrot.slane %v1014, 4
    %v1016 = vmax.f32 %v1014, %v1015
    %v1017 = vrot.slane %v1016, 2
    %v1018 = vmax.f32 %v1016, %v1017
    %v1019 = vrot.slane %v1018, 1
    %v1020 = vmax.f32 %v1018, %v1019
    %v1021 = vsub.f32 %v1005, %v1013
    %v1022 = vsub.f32 %v1006, %v1020
    %v1023 = vmul.f32 %v1021, 1.442695
    %v1024 = vpow.pop %v1023
    %v1025 = vmul.f32 %v1022, 1.442695
    %v1026 = vpow.pop %v1025
    %v1027 = vsel %vm242, %v1024, 0.0
    %v1028 = vrot.slane %v1027, 4
    %v1029 = vadd.f32 %v1027, %v1028
    %v1030 = vrot.slane %v1029, 2
    %v1031 = vadd.f32 %v1029, %v1030
    %v1032 = vrot.slane %v1031, 1
    %v1033 = vadd.f32 %v1031, %v1032
    %v1034 = vsel %vm242, %v1026, 0.0
    %v1035 = vrot.slane %v1034, 4
    %v1036 = vadd.f32 %v1034, %v1035
    %v1037 = vrot.slane %v1036, 2
    %v1038 = vadd.f32 %v1036, %v1037
    %v1039 = vrot.slane %v1038, 1
    %v1040 = vadd.f32 %v1038, %v1039
    %v1041 = vlog2.pop %v1033
    %v1042 = vmul.f32 %v1041, 0.6931472
    %v1043 = vlog2.pop %v1040
    %v1044 = vmul.f32 %v1043, 0.6931472
    %v1045 = vadd.f32 %v1013, %v1042
    %v1046 = vadd.f32 %v1020, %v1044
    %v1047 = vsub.f32 %v1005, %v1045
    %v1048 = vsub.f32 %v1006, %v1046
    %v1049 = vmul.f32 %v1047, 1.442695
    %v1050 = vpow.pop %v1049
    %v1051 = vmul.f32 %v1048, 1.442695
    %v1052 = vpow.pop %v1051
    %v1053 = vmul.f32 %v1050, %v291
    %v1054 = vmul.f32 %v1052, %v292
    %v1055 = vsel %vm242, %v1053, 0.0
    %1056 = vadd.xlane.f32.xlu0 %v1055
    %v1057 = vpop.xlane.xlu0 %1056
    %v1058 = vsel %vm242, %v1054, 0.0
    %1059 = vadd.xlane.f32.xlu0 %v1058
    %v1060 = vpop.xlane.xlu0 %1059
    %v1061 = vadd.f32 %v1057, 1.0
    %v1062 = vadd.f32 %v1060, 1.0
    %v1063 = vrcp.pop %v1061
    %v1064 = vmul.f32 %v1061, %v1063
    %v1065 = vsub.f32 1.0, %v1064
    %v1066 = vmul.f32 %v1063, %v1065
    %v1067 = vadd.f32 %v1063, %v1066
    %vm1068 = vweird.f32 %v1061
    %vm1069 = vweird.f32 %v1063
    %vm1070 = vmor %vm1068, %vm1069
    %v1071 = vsel %vm1070, %v1063, %v1067
    %v1072 = vand.u32 2147483647, %v1061
    %vm1073 = vcmp.eq.f32.partialorder %v1072, 8.507059e+37
    %v1074 = vand.u32 %v1061, 2147483648
    %v1075 = vor.u32 1.1754944e-38, %v1074
    %v1076 = vsel %vm1073, %v1075, %v1071
    %v1077 = vrcp.pop %v1062
    %v1078 = vmul.f32 %v1062, %v1077
    %v1079 = vsub.f32 1.0, %v1078
    %v1080 = vmul.f32 %v1077, %v1079
    %v1081 = vadd.f32 %v1077, %v1080
    %vm1082 = vweird.f32 %v1062
    %vm1083 = vweird.f32 %v1077
    %vm1084 = vmor %vm1082, %vm1083
    %v1085 = vsel %vm1084, %v1077, %v1081
    %v1086 = vand.u32 2147483647, %v1062
    %vm1087 = vcmp.eq.f32.partialorder %v1086, 8.507059e+37
    %v1088 = vand.u32 %v1062, 2147483648
    %v1089 = vor.u32 1.1754944e-38, %v1088
    %v1090 = vsel %vm1087, %v1089, %v1085
    %v1091 = vsel %vm333, %v1061, 0.0
    %v1092 = vrot.slane %v1091, 4
    %v1093 = vadd.f32 %v1091, %v1092
    %v1094 = vrot.slane %v1093, 2
    %v1095 = vadd.f32 %v1093, %v1094
    %v1096 = vrot.slane %v1095, 1
    %v1097 = vadd.f32 %v1095, %v1096
    %v1098 = vsel %vm333, %v1062, 0.0
    %v1099 = vrot.slane %v1098, 4
    %v1100 = vadd.f32 %v1098, %v1099
    %v1101 = vrot.slane %v1100, 2
    %v1102 = vadd.f32 %v1100, %v1101
    %v1103 = vrot.slane %v1102, 1
    %v1104 = vadd.f32 %v1102, %v1103
    %v1105 = vrcp.pop %v1097
    %v1106 = vmul.f32 %v1097, %v1105
    %v1107 = vsub.f32 1.0, %v1106
    %v1108 = vmul.f32 %v1105, %v1107
    %v1109 = vadd.f32 %v1105, %v1108
    %vm1110 = vweird.f32 %v1097
    %vm1111 = vweird.f32 %v1105
    %vm1112 = vmor %vm1110, %vm1111
    %v1113 = vsel %vm1112, %v1105, %v1109
    %v1114 = vand.u32 2147483647, %v1097
    %vm1115 = vcmp.eq.f32.partialorder %v1114, 8.507059e+37
    %v1116 = vand.u32 %v1097, 2147483648
    %v1117 = vor.u32 1.1754944e-38, %v1116
    %v1118 = vsel %vm1115, %v1117, %v1113
    %v1119 = vrcp.pop %v1104
    %v1120 = vmul.f32 %v1104, %v1119
    %v1121 = vsub.f32 1.0, %v1120
    %v1122 = vmul.f32 %v1119, %v1121
    %v1123 = vadd.f32 %v1119, %v1122
    %vm1124 = vweird.f32 %v1104
    %vm1125 = vweird.f32 %v1119
    %vm1126 = vmor %vm1124, %vm1125
    %v1127 = vsel %vm1126, %v1119, %v1123
    %v1128 = vand.u32 2147483647, %v1104
    %vm1129 = vcmp.eq.f32.partialorder %v1128, 8.507059e+37
    %v1130 = vand.u32 %v1104, 2147483648
    %v1131 = vor.u32 1.1754944e-38, %v1130
    %v1132 = vsel %vm1129, %v1131, %v1127
    %v1133 = vmul.f32 %v1061, %v1118
    %v1134 = vmul.f32 %v1062, %v1132
    %v1136 = vsel %vm378, %v1053, 0
    %1138 = vmatpush.msra.mxu0 0.0
    %1139 = vmatpush.msra.mxu0 0.0
    %1140 = vmatpush.msra.mxu0 0.0
    %1141 = vmatpush.msra.mxu0 0.0
    %1142 = vmatpush.msra.mxu0 0.0
    %1143 = vmatpush.msra.mxu0 0.0
    %1144 = vmatpush.msra.mxu0 0.0
    %1145 = vmatpush.msra.mxu0 0.0
    %1146 = vmatpush.msra.mxu0 0.0
    %1147 = vmatpush.msra.mxu0 0.0
    %1148 = vmatpush.msra.mxu0 0.0
    %1149 = vmatpush.msra.mxu0 0.0
    %1150 = vmatpush.msra.mxu0 0.0
    %1151 = vmatpush.msra.mxu0 0.0
    %1152 = vmatpush.msra.mxu0 0.0
    %1153 = vmatpush.msra.mxu0 %v81
    %1154 = vmatmul.f32.gmra.mxu0 %v1136
    %v1155 = vpop.f32.mrf.mxu0
    %v1156 = vadd.f32 %v85, %v1155
    %1157 = vdwg.mxu0
    %v1159 = vsel %vm378, %v1054, 0
    %1161 = vmatpush.msra.mxu0 0.0
    %1162 = vmatpush.msra.mxu0 0.0
    %1163 = vmatpush.msra.mxu0 0.0
    %1164 = vmatpush.msra.mxu0 0.0
    %1165 = vmatpush.msra.mxu0 0.0
    %1166 = vmatpush.msra.mxu0 0.0
    %1167 = vmatpush.msra.mxu0 0.0
    %1168 = vmatpush.msra.mxu0 0.0
    %1169 = vmatpush.msra.mxu0 0.0
    %1170 = vmatpush.msra.mxu0 0.0
    %1171 = vmatpush.msra.mxu0 0.0
    %1172 = vmatpush.msra.mxu0 0.0
    %1173 = vmatpush.msra.mxu0 0.0
    %1174 = vmatpush.msra.mxu0 0.0
    %1175 = vmatpush.msra.mxu0 0.0
    %1176 = vmatpush.msra.mxu0 %v82
    %1177 = vmatmul.f32.gmra.mxu0 %v1159
    %v1178 = vpop.f32.mrf.mxu0
    %v1179 = vadd.f32 %v85, %v1178
    %1180 = vdwg.mxu0
    %v1181 = vmul.f32 %v1156, %v1076
    %v1182 = vmul.f32 %v1179, %v1090
    %1183 = vmatpush.msra.mxu0 0.0
    %1184 = vmatpush.msra.mxu0 0.0
    %1185 = vmatpush.msra.mxu0 0.0
    %1186 = vmatpush.msra.mxu0 0.0
    %1187 = vmatpush.msra.mxu0 0.0
    %1188 = vmatpush.msra.mxu0 0.0
    %1189 = vmatpush.msra.mxu0 0.0
    %1190 = vmatpush.msra.mxu0 0.0
    %1191 = vmatpush.msra.mxu0 0.0
    %1192 = vmatpush.msra.mxu0 0.0
    %1193 = vmatpush.msra.mxu0 0.0
    %1194 = vmatpush.msra.mxu0 0.0
    %1195 = vmatpush.msra.mxu0 0.0
    %1196 = vmatpush.msra.mxu0 0.0
    %1197 = vmatpush.msra.mxu0 0.0
    %1198 = vmatpush.msra.mxu0 %v104
    %1199 = vmatmul.f32.gmra.mxu0 %v1136
    %v1200 = vpop.f32.mrf.mxu0
    %v1201 = vadd.f32 %v107, %v1200
    %1202 = vdwg.mxu0
    %1203 = vmatpush.msra.mxu0 0.0
    %1204 = vmatpush.msra.mxu0 0.0
    %1205 = vmatpush.msra.mxu0 0.0
    %1206 = vmatpush.msra.mxu0 0.0
    %1207 = vmatpush.msra.mxu0 0.0
    %1208 = vmatpush.msra.mxu0 0.0
    %1209 = vmatpush.msra.mxu0 0.0
    %1210 = vmatpush.msra.mxu0 0.0
    %1211 = vmatpush.msra.mxu0 0.0
    %1212 = vmatpush.msra.mxu0 0.0
    %1213 = vmatpush.msra.mxu0 0.0
    %1214 = vmatpush.msra.mxu0 0.0
    %1215 = vmatpush.msra.mxu0 0.0
    %1216 = vmatpush.msra.mxu0 0.0
    %1217 = vmatpush.msra.mxu0 0.0
    %1218 = vmatpush.msra.mxu0 %v105
    %1219 = vmatmul.f32.gmra.mxu0 %v1159
    %v1220 = vpop.f32.mrf.mxu0
    %v1221 = vadd.f32 %v107, %v1220
    %1222 = vdwg.mxu0
    %v1223 = vmul.f32 %v1201, %v1076
    %v1224 = vmul.f32 %v1221, %v1090
    %v1225 = vmul.f32 %v1181, %v1181
    %v1226 = vmul.f32 %v1182, %v1182
    %v1227 = vsub.f32 %v1223, %v1225
    %v1228 = vsub.f32 %v1224, %v1226
    %vm1229 = vcmask 3072
    %1230 = vst.msk [vmem:[%s5] sm:$0xf] %vm1229, %v1133
    %1231 = vst.msk [vmem:[%s5 + $0x4] sm:$0xf] %vm1229, %v1134
    %1232 = vst.msk [vmem:[#allocation11] sm:$0xf] %vm102, %v1181
    %1233 = vst.msk [vmem:[#allocation11 + $0x4] sm:$0xf] %vm102, %v1227
    %1234 = vst.msk [vmem:[#allocation11 + $0x8] sm:$0xf] %vm102, %v1182
    %1235 = vst.msk [vmem:[#allocation11 + $0xc] sm:$0xf] %vm102, %v1228
    // Predicated region
    $region34: #{tpu_custom_call.1} parent=1 // pred_check
      _
    $region35: #{tpu_custom_call.1} parent=1 // pred_check_branch
      %1237 = sbr.rel (0) target = $region37
    $region36: #{tpu_custom_call.1} parent=1 // pred_region
      %1239 = vsyncadd [#allocation4], 0
      %s1241 = sshll.u32 [#allocation10], 4
      %s1242 = int_to_ptr.vmem [resolvable:$true] %s1241
      %s1243 = sshll.u32 %s4, 4
      %s1244 = int_to_ptr.hbm [resolvable:$true] %s1243
      %1246 = dma.vmem_to_hbm [thread:$0]  %s1242, 64, %s1244, [#allocation4]
    $region37: #{tpu_custom_call.1} parent=1 // pred_fallthru
      _
    // Predicated region
    $region38: #{tpu_custom_call.1} parent=1 // pred_check
      _
    $region39: #{tpu_custom_call.1} parent=1 // pred_check_branch
      %1248 = sbr.rel (0) target = $region41
    $region40: #{tpu_custom_call.1} parent=1 // pred_region
      _
    $region41: #{tpu_custom_call.1} parent=1 // pred_fallthru
      _
    // Predicated region
    $region42: #{tpu_custom_call.1} parent=1 // pred_check
      _
    $region43: #{tpu_custom_call.1} parent=1 // pred_check_branch
      %1250 = sbr.rel (0) target = $region45
    $region44: #{tpu_custom_call.1} parent=1 // pred_region
      %1252 = vsyncadd [#allocation12], 0
      %s1253 = sshll.u32 [#allocation11], 4
      %s1254 = int_to_ptr.vmem [resolvable:$true] %s1253
      %s1255 = sshll.u32 %s6, 4
      %s1256 = int_to_ptr.hbm [resolvable:$true] %s1255
      %1261 = dma.vmem_to_hbm [thread:$0]  %s1254, 256, %s1256, [#allocation12], 64, 64, 4
    $region45: #{tpu_custom_call.1} parent=1 // pred_fallthru
      _
    // Predicated region
    $region46: #{tpu_custom_call.1} parent=1 // pred_check
      _
    $region47: #{tpu_custom_call.1} parent=1 // pred_check_branch
      %1263 = sbr.rel (0) target = $region49
    $region48: #{tpu_custom_call.1} parent=1 // pred_region
      %1265 = dma.done [#allocation4], 64
    $region49: #{tpu_custom_call.1} parent=1 // pred_fallthru
      _
    // Predicated region
    $region50: #{tpu_custom_call.1} parent=1 // pred_check
      _
    $region51: #{tpu_custom_call.1} parent=1 // pred_check_branch
      %1267 = sbr.rel (0) target = $region53
    $region52: #{tpu_custom_call.1} parent=1 // pred_region
      _
    $region53: #{tpu_custom_call.1} parent=1 // pred_fallthru
      _
    // Predicated region
    $region54: #{tpu_custom_call.1} parent=1 // pred_check
      _
    $region55: #{tpu_custom_call.1} parent=1 // pred_check_branch
      %1269 = sbr.rel (0) target = $region57
    $region56: #{tpu_custom_call.1} parent=1 // pred_region
      %1271 = dma.done [#allocation12], 256
    $region57: #{tpu_custom_call.1} parent=1 // pred_fallthru
      _
    %1272 = vsyncpa [#allocation3], 1
    %1273 = vsyncpa [#allocation6], 1
    %1274 = vsyncpa [#allocation9], 1
    %1275 = vsyncpa [#allocation4], 1
    %1276 = vsyncpa [#allocation12], 1

</llo_original>
